<compile_context>
chip_gen: v7x
topology: tpu7x:2x2x1
jax: 0.10.0
libtpu: 0.0.40
codegen_flags: <defaults>
</compile_context>

<pallas_src>
import jax
import jax.numpy as jnp
from jax.experimental import pallas as pl
from jax.experimental.pallas import tpu as pltpu

# ----------------------------- sizes (small, synthetic) ---------------------
B = 2              # batch
BPAD = 8           # batch padded to a full f32 sublane group
S = 8              # text sequence length
VOCAB_TXT = 64     # text vocab (stand-in for BERT vocab)
D_TXT = 32         # text hidden size (stand-in for 768)
C_IMG = 4          # image channels
HW_IMG = 16        # image spatial size (H = W)
D_IMG = 64         # image feature size (stand-in for 2048)
D_DEC = 32         # decoder hidden size (stand-in for GPT2 n_embd)
D_FF = 64          # decoder MLP hidden
VOCAB_DEC = 128    # decoder vocab (stand-in for 50257) -> lane-dense output
BOS_ID = 3

K_IMG = 9 * C_IMG              # im2col contraction dim (3x3 conv taps * C)
NPOS = HW_IMG * HW_IMG         # spatial positions per image
NPAT = B * NPOS                # total im2col rows

_VMEM = pl.BlockSpec(memory_space=pltpu.MemorySpace.VMEM)


# ----------------------------- fused Pallas kernel ---------------------------
def _fused_forward_kernel(
        cls_ref, patch_ref, pool_ref, h0_ref,
        txt_w_ref, txt_b_ref,
        img_w_ref, img_b_ref,
        wtp_ref, wip_ref, fpb_ref,
        wvo_ref,
        w1_ref, b1_ref, w2_ref, b2_ref,
        wte_t_ref,
        o_ref):
    """Whole forward pass; every operand resident in VMEM (all << 1 MiB)."""
    f32 = jnp.float32
    bf16 = jnp.bfloat16

    # -- text encoder: dense+GELU on the CLS rows only (layer is row-wise) ---
    # TODO(synk): full multi-layer BERT stack not reproduced; tanh-GELU used
    # (real BERT uses erf-GELU) -- small numeric difference, stand-in only.
    text = jax.nn.gelu(
        jnp.dot(cls_ref[...], txt_w_ref[...], preferred_element_type=f32)
        + txt_b_ref[...], approximate=True)                     # (BPAD, D_TXT) f32

    # -- image encoder: conv-as-2D-matmul + ReLU, mean-pool as MXU matmul ----
    # TODO(synk): full ResNet50 backbone not reproduced (single conv stand-in).
    y = jnp.dot(patch_ref[...], img_w_ref[...], preferred_element_type=f32)
    y = jnp.maximum(y + img_b_ref[...], 0.0)                    # (NPAT, D_IMG) f32
    img = jnp.dot(pool_ref[...], y.astype(bf16),
                  preferred_element_type=f32)                   # (BPAD, D_IMG) f32

    # -- fusion + embedding projection (concat + 2 Linears folded host-side) -
    enc = (jnp.dot(text.astype(bf16), wtp_ref[...], preferred_element_type=f32)
           + jnp.dot(img.astype(bf16), wip_ref[...], preferred_element_type=f32)
           + fpb_ref[...])                                      # (BPAD, D_DEC) f32

    # -- decoder: bos embed (h0 precomputed) + cross-attn V*O (fused) + MLP --
    # TODO(synk): full GPT2 stack / LayerNorms / softmax cross-attn not
    # reproduced (single-key cross-attn collapses to the V/O projection).
    h = h0_ref[...] + jnp.dot(enc.astype(bf16), wvo_ref[...],
                              preferred_element_type=f32)       # (BPAD, D_DEC)
    m = jax.nn.gelu(
        jnp.dot(h.astype(bf16), w1_ref[...], preferred_element_type=f32)
        + b1_ref[...], approximate=True)                        # (BPAD, D_FF)
    h = h + jnp.dot(m.astype(bf16), w2_ref[...], preferred_element_type=f32) \
          + b2_ref[...]

    # -- tied LM head: pre-transposed wte_T -> lane-dense (BPAD,128) store ---
    o_ref[...] = jnp.dot(h.astype(bf16), wte_t_ref[...],
                         preferred_element_type=f32)            # (BPAD, VOCAB_DEC)


def _fused_call(cls_emb, patches, pp):
    args = (cls_emb, patches, pp["pool"], pp["h0"],
            pp["txt_w"], pp["txt_b"],
            pp["img_w"], pp["img_b"],
            pp["wtp"], pp["wip"], pp["fpb"],
            pp["wvo"],
            pp["dec_w1"], pp["dec_b1"], pp["dec_w2"], pp["dec_b2"],
            pp["wte_t"])
    flops = 2 * (BPAD * D_TXT * D_TXT          # text dense
                 + NPAT * K_IMG * D_IMG        # conv as matmul
                 + BPAD * NPAT * D_IMG         # global-avg-pool as matmul
                 + BPAD * D_TXT * D_DEC        # fused fusion+proj (text half)
                 + BPAD * D_IMG * D_DEC        # fused fusion+proj (image half)
                 + BPAD * D_DEC * D_DEC        # fused wv@wo
                 + BPAD * D_DEC * D_FF         # dec w1
                 + BPAD * D_FF * D_DEC         # dec w2
                 + BPAD * D_DEC * VOCAB_DEC)   # LM head
    bytes_accessed = (sum(int(a.size) * a.dtype.itemsize for a in args)
                      + BPAD * VOCAB_DEC * 4)
    cost = pl.CostEstimate(flops=flops,
                           transcendentals=BPAD * (D_TXT + D_FF),
                           bytes_accessed=bytes_accessed)
    return pl.pallas_call(
        _fused_forward_kernel,
        out_shape=jax.ShapeDtypeStruct((BPAD, VOCAB_DEC), jnp.float32),
        in_specs=[_VMEM] * len(args),
        out_specs=_VMEM,
        cost_estimate=cost,
    )(*args)


# ----------------------------- params ----------------------------------------
def init_params(key):
    ks = jax.random.split(key, 12)
    n = lambda k, shape: 0.02 * jax.random.normal(k, shape, dtype=jnp.float32)
    return {
        # text "BERT" stand-in
        "txt_emb": n(ks[0], (VOCAB_TXT, D_TXT)),
        "txt_pos": n(ks[1], (S, D_TXT)),
        "txt_w": n(ks[2], (D_TXT, D_TXT)),
        "txt_b": jnp.zeros((1, D_TXT), jnp.float32),
        # image "ResNet" stand-in (one 3x3 conv + GAP)
        "img_w": n(ks[3], (K_IMG, D_IMG)),
        "img_b": jnp.zeros((1, D_IMG), jnp.float32),
        # fusion_layer: Linear(D_TXT + D_IMG -> D_TXT)
        "fus_w": n(ks[4], (D_TXT + D_IMG, D_TXT)),
        "fus_b": jnp.zeros((1, D_TXT), jnp.float32),
        # embedding_projection: Linear(D_TXT -> D_DEC)
        "proj_w": n(ks[5], (D_TXT, D_DEC)),
        "proj_b": jnp.zeros((1, D_DEC), jnp.float32),
        # "GPT2" decoder stand-in
        "wte": n(ks[6], (VOCAB_DEC, D_DEC)),
        "wpe": n(ks[7], (1, D_DEC)),
        "dec_wv": n(ks[8], (D_DEC, D_DEC)),
        "dec_wo": n(ks[9], (D_DEC, D_DEC)),
        "dec_w1": n(ks[10], (D_DEC, D_FF)),
        "dec_b1": jnp.zeros((1, D_FF), jnp.float32),
        "dec_w2": n(ks[11], (D_FF, D_DEC)),
        "dec_b2": jnp.zeros((1, D_DEC), jnp.float32),
    }


def prep_params(p):
    """Host-side precompute: fuse nonlinearity-free weight chains, cast matmul
    operands to bf16 (biases stay f32), build the constant pool matrix and the
    pre-transposed LM head.  Everything stays at natural (unpadded) shapes."""
    bf = jnp.bfloat16
    # compile-time-constant global-average-pool matrix (padded batch rows = 0)
    pool = jnp.zeros((BPAD, NPAT), jnp.float32)
    for b in range(B):
        pool = pool.at[b, b * NPOS:(b + 1) * NPOS].set(1.0 / NPOS)
    return {
        # wrapper-side (embedding gather happens outside the kernel)
        "txt_emb": p["txt_emb"],
        "txt_pos0": p["txt_pos"][0][None, :],
        # text encoder layer
        "txt_w": p["txt_w"].astype(bf),
        "txt_b": p["txt_b"],
        # image encoder layer
        "img_w": p["img_w"].astype(bf),
        "img_b": p["img_b"],
        "pool": pool.astype(bf),
        # fusion + embedding_projection folded into two products + one bias
        "wtp": (p["fus_w"][:D_TXT] @ p["proj_w"]).astype(bf),
        "wip": (p["fus_w"][D_TXT:] @ p["proj_w"]).astype(bf),
        "fpb": p["fus_b"] @ p["proj_w"] + p["proj_b"],
        # decoder: wv@wo folded, bos-token embedding + pos folded into h0
        "wvo": (p["dec_wv"] @ p["dec_wo"]).astype(bf),
        "h0": p["wte"][BOS_ID][None, :] + p["wpe"],
        "dec_w1": p["dec_w1"].astype(bf),
        "dec_b1": p["dec_b1"],
        "dec_w2": p["dec_w2"].astype(bf),
        "dec_b2": p["dec_b2"],
        # tied LM head, pre-transposed (no in-kernel XLU transpose)
        "wte_t": p["wte"].T.astype(bf),
    }


# ----------------------------- glue + forward --------------------------------
def im2col_3x3(x_nhwc):
    """3x3 same-padding im2col flattened to 2D: (B,H,W,C) -> (B*H*W, 9*C)."""
    b, h, w, c = x_nhwc.shape
    xp = jnp.pad(x_nhwc, ((0, 0), (1, 1), (1, 1), (0, 0)))
    taps = [xp[:, dh:dh + h, dw:dw + w, :] for dh in range(3) for dw in range(3)]
    p = jnp.stack(taps, axis=3)                  # (B, H, W, 9, C)
    return p.reshape(b * h * w, 9 * c)           # 2D -> single MXU matmul


def cross_modal_forward(prepped, input_ids, input_image_nchw):
    """input_ids: (B, S) int32 (tokenization done upstream).
       input_image_nchw: (B, C, H, W) float32 (PyTorch layout)."""
    pp = prepped

    # Text: embedding lookup for the CLS position only (the stand-in encoder
    # layer is row-wise, so slicing before the dense layer is bit-identical).
    cls = jnp.take(pp["txt_emb"], input_ids[:, 0], axis=0) + pp["txt_pos0"]
    cls = jnp.zeros((BPAD, D_TXT), jnp.float32).at[:B].set(cls)   # pad sublanes
    cls = cls.astype(jnp.bfloat16)

    # Image: NCHW -> NHWC, 3x3 same-padding im2col flattened to 2D.
    x_nhwc = jnp.transpose(input_image_nchw, (0, 2, 3, 1))
    patches = im2col_3x3(x_nhwc).astype(jnp.bfloat16)             # (NPAT, K_IMG)

    logits = _fused_call(cls, patches, pp)                        # (BPAD, VOCAB_DEC)
    return logits[:B].reshape(B, 1, VOCAB_DEC)                    # (B, seq=1, vocab)


if __name__ == "__main__":
    key = jax.random.PRNGKey(0)
    k_p, k_ids, k_img = jax.random.split(key, 3)

    params = init_params(k_p)
    prepped = prep_params(params)
    input_ids = jax.random.randint(k_ids, (B, S), 0, VOCAB_TXT, dtype=jnp.int32)
    input_image = jax.random.normal(k_img, (B, C_IMG, HW_IMG, HW_IMG),
                                    dtype=jnp.float32)

    fwd = jax.jit(cross_modal_forward)
    logits = fwd(prepped, input_ids, input_image)
    jax.block_until_ready(logits)

    assert logits.shape == (B, 1, VOCAB_DEC) and logits.dtype == jnp.float32
    print("KERNEL_OK")
</pallas_src>

<mosaic_0001>
module attributes {stable_mosaic.version = 11 : i64} {
  func.func @_fused_forward_kernel(%arg0: memref<8x32xbf16, #tpu.memory_space<vmem>>, %arg1: memref<512x36xbf16, #tpu.memory_space<vmem>>, %arg2: memref<8x512xbf16, #tpu.memory_space<vmem>>, %arg3: memref<1x32xf32, #tpu.memory_space<vmem>>, %arg4: memref<32x32xbf16, #tpu.memory_space<vmem>>, %arg5: memref<1x32xf32, #tpu.memory_space<vmem>>, %arg6: memref<36x64xbf16, #tpu.memory_space<vmem>>, %arg7: memref<1x64xf32, #tpu.memory_space<vmem>>, %arg8: memref<32x32xbf16, #tpu.memory_space<vmem>>, %arg9: memref<64x32xbf16, #tpu.memory_space<vmem>>, %arg10: memref<1x32xf32, #tpu.memory_space<vmem>>, %arg11: memref<32x32xbf16, #tpu.memory_space<vmem>>, %arg12: memref<32x64xbf16, #tpu.memory_space<vmem>>, %arg13: memref<1x64xf32, #tpu.memory_space<vmem>>, %arg14: memref<64x32xbf16, #tpu.memory_space<vmem>>, %arg15: memref<1x32xf32, #tpu.memory_space<vmem>>, %arg16: memref<32x128xbf16, #tpu.memory_space<vmem>>, %arg17: memref<8x128xf32, #tpu.memory_space<vmem>>) attributes {dimension_semantics = [], scalar_prefetch = 0 : i64, scratch_operands = 0 : i64, tpu.core_type = #tpu.core_type<tc>} {
    %c0 = arith.constant 0 : index
    %c0_0 = arith.constant 0 : index
    %0 = vector.load %arg0[%c0, %c0_0] : memref<8x32xbf16, #tpu.memory_space<vmem>>, vector<8x32xbf16>
    %c0_1 = arith.constant 0 : index
    %c0_2 = arith.constant 0 : index
    %1 = vector.load %arg4[%c0_1, %c0_2] : memref<32x32xbf16, #tpu.memory_space<vmem>>, vector<32x32xbf16>
    %cst = arith.constant dense<0.000000e+00> : vector<8x32xf32>
    %2 = tpu.matmul %0, %1, %cst {dimension_numbers = #tpu.dot_dimension_numbers<[1], [0], [0], [1], [0, 0, 1, 1], [], []>} : vector<8x32xbf16>, vector<32x32xbf16>, vector<8x32xf32> -> vector<8x32xf32>
    %c0_3 = arith.constant 0 : index
    %c0_4 = arith.constant 0 : index
    %3 = vector.load %arg5[%c0_3, %c0_4] : memref<1x32xf32, #tpu.memory_space<vmem>>, vector<1x32xf32>
    %4 = vector.broadcast %3 : vector<1x32xf32> to vector<8x32xf32>
    %5 = arith.addf %2, %4 : vector<8x32xf32>
    %6 = arith.mulf %5, %5 : vector<8x32xf32>
    %7 = arith.mulf %5, %6 : vector<8x32xf32>
    %cst_5 = arith.constant 4.471500e-02 : f32
    %8 = vector.broadcast %cst_5 : f32 to vector<8x32xf32>
    %9 = arith.mulf %8, %7 : vector<8x32xf32>
    %10 = arith.addf %5, %9 : vector<8x32xf32>
    %cst_6 = arith.constant 0.797884583 : f32
    %11 = vector.broadcast %cst_6 : f32 to vector<8x32xf32>
    %12 = arith.mulf %11, %10 : vector<8x32xf32>
    %13 = math.tanh %12 : vector<8x32xf32>
    %cst_7 = arith.constant 1.000000e+00 : f32
    %14 = vector.broadcast %cst_7 : f32 to vector<8x32xf32>
    %15 = arith.addf %14, %13 : vector<8x32xf32>
    %cst_8 = arith.constant 5.000000e-01 : f32
    %16 = vector.broadcast %cst_8 : f32 to vector<8x32xf32>
    %17 = arith.mulf %16, %15 : vector<8x32xf32>
    %18 = arith.mulf %5, %17 : vector<8x32xf32>
    %c0_9 = arith.constant 0 : index
    %c0_10 = arith.constant 0 : index
    %19 = vector.load %arg1[%c0_9, %c0_10] : memref<512x36xbf16, #tpu.memory_space<vmem>>, vector<512x36xbf16>
    %c0_11 = arith.constant 0 : index
    %c0_12 = arith.constant 0 : index
    %20 = vector.load %arg6[%c0_11, %c0_12] : memref<36x64xbf16, #tpu.memory_space<vmem>>, vector<36x64xbf16>
    %cst_13 = arith.constant dense<0.000000e+00> : vector<512x64xf32>
    %21 = tpu.matmul %19, %20, %cst_13 {dimension_numbers = #tpu.dot_dimension_numbers<[1], [0], [0], [1], [0, 0, 1, 1], [], []>} : vector<512x36xbf16>, vector<36x64xbf16>, vector<512x64xf32> -> vector<512x64xf32>
    %c0_14 = arith.constant 0 : index
    %c0_15 = arith.constant 0 : index
    %22 = vector.load %arg7[%c0_14, %c0_15] : memref<1x64xf32, #tpu.memory_space<vmem>>, vector<1x64xf32>
    %23 = vector.broadcast %22 : vector<1x64xf32> to vector<512x64xf32>
    %24 = arith.addf %21, %23 : vector<512x64xf32>
    %cst_16 = arith.constant 0.000000e+00 : f32
    %25 = vector.broadcast %cst_16 : f32 to vector<512x64xf32>
    %26 = arith.maximumf %24, %25 : vector<512x64xf32>
    %c0_17 = arith.constant 0 : index
    %c0_18 = arith.constant 0 : index
    %27 = vector.load %arg2[%c0_17, %c0_18] : memref<8x512xbf16, #tpu.memory_space<vmem>>, vector<8x512xbf16>
    %28 = arith.truncf %26 : vector<512x64xf32> to vector<512x64xbf16>
    %cst_19 = arith.constant dense<0.000000e+00> : vector<8x64xf32>
    %29 = tpu.matmul %27, %28, %cst_19 {dimension_numbers = #tpu.dot_dimension_numbers<[1], [0], [0], [1], [0, 0, 1, 1], [], []>} : vector<8x512xbf16>, vector<512x64xbf16>, vector<8x64xf32> -> vector<8x64xf32>
    %30 = arith.truncf %18 : vector<8x32xf32> to vector<8x32xbf16>
    %c0_20 = arith.constant 0 : index
    %c0_21 = arith.constant 0 : index
    %31 = vector.load %arg8[%c0_20, %c0_21] : memref<32x32xbf16, #tpu.memory_space<vmem>>, vector<32x32xbf16>
    %cst_22 = arith.constant dense<0.000000e+00> : vector<8x32xf32>
    %32 = tpu.matmul %30, %31, %cst_22 {dimension_numbers = #tpu.dot_dimension_numbers<[1], [0], [0], [1], [0, 0, 1, 1], [], []>} : vector<8x32xbf16>, vector<32x32xbf16>, vector<8x32xf32> -> vector<8x32xf32>
    %33 = arith.truncf %29 : vector<8x64xf32> to vector<8x64xbf16>
    %c0_23 = arith.constant 0 : index
    %c0_24 = arith.constant 0 : index
    %34 = vector.load %arg9[%c0_23, %c0_24] : memref<64x32xbf16, #tpu.memory_space<vmem>>, vector<64x32xbf16>
    %cst_25 = arith.constant dense<0.000000e+00> : vector<8x32xf32>
    %35 = tpu.matmul %33, %34, %cst_25 {dimension_numbers = #tpu.dot_dimension_numbers<[1], [0], [0], [1], [0, 0, 1, 1], [], []>} : vector<8x64xbf16>, vector<64x32xbf16>, vector<8x32xf32> -> vector<8x32xf32>
    %36 = arith.addf %32, %35 : vector<8x32xf32>
    %c0_26 = arith.constant 0 : index
    %c0_27 = arith.constant 0 : index
    %37 = vector.load %arg10[%c0_26, %c0_27] : memref<1x32xf32, #tpu.memory_space<vmem>>, vector<1x32xf32>
    %38 = vector.broadcast %37 : vector<1x32xf32> to vector<8x32xf32>
    %39 = arith.addf %36, %38 : vector<8x32xf32>
    %c0_28 = arith.constant 0 : index
    %c0_29 = arith.constant 0 : index
    %40 = vector.load %arg3[%c0_28, %c0_29] : memref<1x32xf32, #tpu.memory_space<vmem>>, vector<1x32xf32>
    %41 = arith.truncf %39 : vector<8x32xf32> to vector<8x32xbf16>
    %c0_30 = arith.constant 0 : index
    %c0_31 = arith.constant 0 : index
    %42 = vector.load %arg11[%c0_30, %c0_31] : memref<32x32xbf16, #tpu.memory_space<vmem>>, vector<32x32xbf16>
    %cst_32 = arith.constant dense<0.000000e+00> : vector<8x32xf32>
    %43 = tpu.matmul %41, %42, %cst_32 {dimension_numbers = #tpu.dot_dimension_numbers<[1], [0], [0], [1], [0, 0, 1, 1], [], []>} : vector<8x32xbf16>, vector<32x32xbf16>, vector<8x32xf32> -> vector<8x32xf32>
    %44 = vector.broadcast %40 : vector<1x32xf32> to vector<8x32xf32>
    %45 = arith.addf %44, %43 : vector<8x32xf32>
    %46 = arith.truncf %45 : vector<8x32xf32> to vector<8x32xbf16>
    %c0_33 = arith.constant 0 : index
    %c0_34 = arith.constant 0 : index
    %47 = vector.load %arg12[%c0_33, %c0_34] : memref<32x64xbf16, #tpu.memory_space<vmem>>, vector<32x64xbf16>
    %cst_35 = arith.constant dense<0.000000e+00> : vector<8x64xf32>
    %48 = tpu.matmul %46, %47, %cst_35 {dimension_numbers = #tpu.dot_dimension_numbers<[1], [0], [0], [1], [0, 0, 1, 1], [], []>} : vector<8x32xbf16>, vector<32x64xbf16>, vector<8x64xf32> -> vector<8x64xf32>
    %c0_36 = arith.constant 0 : index
    %c0_37 = arith.constant 0 : index
    %49 = vector.load %arg13[%c0_36, %c0_37] : memref<1x64xf32, #tpu.memory_space<vmem>>, vector<1x64xf32>
    %50 = vector.broadcast %49 : vector<1x64xf32> to vector<8x64xf32>
    %51 = arith.addf %48, %50 : vector<8x64xf32>
    %52 = arith.mulf %51, %51 : vector<8x64xf32>
    %53 = arith.mulf %51, %52 : vector<8x64xf32>
    %cst_38 = arith.constant 4.471500e-02 : f32
    %54 = vector.broadcast %cst_38 : f32 to vector<8x64xf32>
    %55 = arith.mulf %54, %53 : vector<8x64xf32>
    %56 = arith.addf %51, %55 : vector<8x64xf32>
    %cst_39 = arith.constant 0.797884583 : f32
    %57 = vector.broadcast %cst_39 : f32 to vector<8x64xf32>
    %58 = arith.mulf %57, %56 : vector<8x64xf32>
    %59 = math.tanh %58 : vector<8x64xf32>
    %cst_40 = arith.constant 1.000000e+00 : f32
    %60 = vector.broadcast %cst_40 : f32 to vector<8x64xf32>
    %61 = arith.addf %60, %59 : vector<8x64xf32>
    %cst_41 = arith.constant 5.000000e-01 : f32
    %62 = vector.broadcast %cst_41 : f32 to vector<8x64xf32>
    %63 = arith.mulf %62, %61 : vector<8x64xf32>
    %64 = arith.mulf %51, %63 : vector<8x64xf32>
    %65 = arith.truncf %64 : vector<8x64xf32> to vector<8x64xbf16>
    %c0_42 = arith.constant 0 : index
    %c0_43 = arith.constant 0 : index
    %66 = vector.load %arg14[%c0_42, %c0_43] : memref<64x32xbf16, #tpu.memory_space<vmem>>, vector<64x32xbf16>
    %cst_44 = arith.constant dense<0.000000e+00> : vector<8x32xf32>
    %67 = tpu.matmul %65, %66, %cst_44 {dimension_numbers = #tpu.dot_dimension_numbers<[1], [0], [0], [1], [0, 0, 1, 1], [], []>} : vector<8x64xbf16>, vector<64x32xbf16>, vector<8x32xf32> -> vector<8x32xf32>
    %68 = arith.addf %45, %67 : vector<8x32xf32>
    %c0_45 = arith.constant 0 : index
    %c0_46 = arith.constant 0 : index
    %69 = vector.load %arg15[%c0_45, %c0_46] : memref<1x32xf32, #tpu.memory_space<vmem>>, vector<1x32xf32>
    %70 = vector.broadcast %69 : vector<1x32xf32> to vector<8x32xf32>
    %71 = arith.addf %68, %70 : vector<8x32xf32>
    %72 = arith.truncf %71 : vector<8x32xf32> to vector<8x32xbf16>
    %c0_47 = arith.constant 0 : index
    %c0_48 = arith.constant 0 : index
    %73 = vector.load %arg16[%c0_47, %c0_48] : memref<32x128xbf16, #tpu.memory_space<vmem>>, vector<32x128xbf16>
    %cst_49 = arith.constant dense<0.000000e+00> : vector<8x128xf32>
    %74 = tpu.matmul %72, %73, %cst_49 {dimension_numbers = #tpu.dot_dimension_numbers<[1], [0], [0], [1], [0, 0, 1, 1], [], []>} : vector<8x32xbf16>, vector<32x128xbf16>, vector<8x128xf32> -> vector<8x128xf32>
    %c0_50 = arith.constant 0 : index
    %c0_51 = arith.constant 0 : index
    %75 = vector.load %arg17[%c0_50, %c0_51] : memref<8x128xf32, #tpu.memory_space<vmem>>, vector<8x128xf32>
    tpu.vector_store %arg17[%c0_50, %c0_51], %74 {strides = array<i32>} : memref<8x128xf32, #tpu.memory_space<vmem>>, vector<8x128xf32>,
    return
  }
}

</mosaic_0001>

<llo_original>
// kernel: cross_modal_forward.1
$region0: #{cross_modal_forward.1}
  #allocation0 [shape = 'u32[]', space=smem, size = 0x4, offset = 0x4, fixed_abs, tag = 'smem constant byte address 0x4 - core index']
  #allocation1 [shape = 'u32[144,128]{1,0:T(1,128)}', space=vmem, size = 0x12000, scoped, tag = 'internal scratch']
  %s0 = inlined_call_operand.vmem [shape: bf16[8,32], index: 0, kind: input, shape index: {}]
  %s1 = inlined_call_operand.vmem [shape: bf16[512,36], index: 1, kind: input, shape index: {}]
  %s2 = inlined_call_operand.vmem [shape: bf16[8,512], index: 2, kind: input, shape index: {}]
  %s3 = inlined_call_operand.vmem [shape: f32[1,32], index: 3, kind: input, shape index: {}]
  %s4 = inlined_call_operand.vmem [shape: bf16[32,32], index: 4, kind: input, shape index: {}]
  %s5 = inlined_call_operand.vmem [shape: f32[1,32], index: 5, kind: input, shape index: {}]
  %s6 = inlined_call_operand.vmem [shape: bf16[36,64], index: 6, kind: input, shape index: {}]
  %s7 = inlined_call_operand.vmem [shape: f32[1,64], index: 7, kind: input, shape index: {}]
  %s8 = inlined_call_operand.vmem [shape: bf16[32,32], index: 8, kind: input, shape index: {}]
  %s9 = inlined_call_operand.vmem [shape: bf16[64,32], index: 9, kind: input, shape index: {}]
  %s10 = inlined_call_operand.vmem [shape: f32[1,32], index: 10, kind: input, shape index: {}]
  %s11 = inlined_call_operand.vmem [shape: bf16[32,32], index: 11, kind: input, shape index: {}]
  %s12 = inlined_call_operand.vmem [shape: bf16[32,64], index: 12, kind: input, shape index: {}]
  %s13 = inlined_call_operand.vmem [shape: f32[1,64], index: 13, kind: input, shape index: {}]
  %s14 = inlined_call_operand.vmem [shape: bf16[64,32], index: 14, kind: input, shape index: {}]
  %s15 = inlined_call_operand.vmem [shape: f32[1,32], index: 15, kind: input, shape index: {}]
  %s16 = inlined_call_operand.vmem [shape: bf16[32,128], index: 16, kind: input, shape index: {}]
  %s17 = inlined_call_operand.vmem [shape: f32[8,128], index: 17, kind: output, shape index: {}]
  %s18 = sld [smem:[#allocation0]]
  $region78: #{cross_modal_forward.1} parent=0
    _
  %s20 = ssub.s32 1, %s18
  %s21 = scalar_select 0, %s20, %s18
  // Predicated region
  $region2: #{cross_modal_forward.1} parent=0 // pred_check
    _
  $region3: #{cross_modal_forward.1} parent=0 // pred_check_branch
    %23 = sbr.rel (0) target = $region5
  $region4: #{cross_modal_forward.1} parent=0 // pred_region
    _
  $region5: #{cross_modal_forward.1} parent=0 // pred_fallthru
    _
  // Predicated region
  $region6: #{cross_modal_forward.1} parent=0 // pred_check
    _
  $region7: #{cross_modal_forward.1} parent=0 // pred_check_branch
    %25 = sbr.rel (0) target = $region9
  $region8: #{cross_modal_forward.1} parent=0 // pred_region
    _
  $region9: #{cross_modal_forward.1} parent=0 // pred_fallthru
    _
  // Predicated region
  $region10: #{cross_modal_forward.1} parent=0 // pred_check
    _
  $region11: #{cross_modal_forward.1} parent=0 // pred_check_branch
    %27 = sbr.rel (0) target = $region13
  $region12: #{cross_modal_forward.1} parent=0 // pred_region
    _
  $region13: #{cross_modal_forward.1} parent=0 // pred_fallthru
    _
  // Predicated region
  $region14: #{cross_modal_forward.1} parent=0 // pred_check
    _
  $region15: #{cross_modal_forward.1} parent=0 // pred_check_branch
    %29 = sbr.rel (0) target = $region17
  $region16: #{cross_modal_forward.1} parent=0 // pred_region
    _
  $region17: #{cross_modal_forward.1} parent=0 // pred_fallthru
    _
  // Predicated region
  $region18: #{cross_modal_forward.1} parent=0 // pred_check
    _
  $region19: #{cross_modal_forward.1} parent=0 // pred_check_branch
    %31 = sbr.rel (0) target = $region21
  $region20: #{cross_modal_forward.1} parent=0 // pred_region
    _
  $region21: #{cross_modal_forward.1} parent=0 // pred_fallthru
    _
  // Predicated region
  $region22: #{cross_modal_forward.1} parent=0 // pred_check
    _
  $region23: #{cross_modal_forward.1} parent=0 // pred_check_branch
    %33 = sbr.rel (0) target = $region25
  $region24: #{cross_modal_forward.1} parent=0 // pred_region
    _
  $region25: #{cross_modal_forward.1} parent=0 // pred_fallthru
    _
  // Predicated region
  $region26: #{cross_modal_forward.1} parent=0 // pred_check
    _
  $region27: #{cross_modal_forward.1} parent=0 // pred_check_branch
    %35 = sbr.rel (0) target = $region29
  $region28: #{cross_modal_forward.1} parent=0 // pred_region
    _
  $region29: #{cross_modal_forward.1} parent=0 // pred_fallthru
    _
  // Predicated region
  $region30: #{cross_modal_forward.1} parent=0 // pred_check
    _
  $region31: #{cross_modal_forward.1} parent=0 // pred_check_branch
    %37 = sbr.rel (0) target = $region33
  $region32: #{cross_modal_forward.1} parent=0 // pred_region
    _
  $region33: #{cross_modal_forward.1} parent=0 // pred_fallthru
    _
  // Predicated region
  $region34: #{cross_modal_forward.1} parent=0 // pred_check
    _
  $region35: #{cross_modal_forward.1} parent=0 // pred_check_branch
    %39 = sbr.rel (0) target = $region37
  $region36: #{cross_modal_forward.1} parent=0 // pred_region
    _
  $region37: #{cross_modal_forward.1} parent=0 // pred_fallthru
    _
  // Predicated region
  $region38: #{cross_modal_forward.1} parent=0 // pred_check
    _
  $region39: #{cross_modal_forward.1} parent=0 // pred_check_branch
    %41 = sbr.rel (0) target = $region41
  $region40: #{cross_modal_forward.1} parent=0 // pred_region
    _
  $region41: #{cross_modal_forward.1} parent=0 // pred_fallthru
    _
  // Predicated region
  $region42: #{cross_modal_forward.1} parent=0 // pred_check
    _
  $region43: #{cross_modal_forward.1} parent=0 // pred_check_branch
    %43 = sbr.rel (0) target = $region45
  $region44: #{cross_modal_forward.1} parent=0 // pred_region
    _
  $region45: #{cross_modal_forward.1} parent=0 // pred_fallthru
    _
  // Predicated region
  $region46: #{cross_modal_forward.1} parent=0 // pred_check
    _
  $region47: #{cross_modal_forward.1} parent=0 // pred_check_branch
    %45 = sbr.rel (0) target = $region49
  $region48: #{cross_modal_forward.1} parent=0 // pred_region
    _
  $region49: #{cross_modal_forward.1} parent=0 // pred_fallthru
    _
  // Predicated region
  $region50: #{cross_modal_forward.1} parent=0 // pred_check
    _
  $region51: #{cross_modal_forward.1} parent=0 // pred_check_branch
    %47 = sbr.rel (0) target = $region53
  $region52: #{cross_modal_forward.1} parent=0 // pred_region
    _
  $region53: #{cross_modal_forward.1} parent=0 // pred_fallthru
    _
  // Predicated region
  $region54: #{cross_modal_forward.1} parent=0 // pred_check
    _
  $region55: #{cross_modal_forward.1} parent=0 // pred_check_branch
    %49 = sbr.rel (0) target = $region57
  $region56: #{cross_modal_forward.1} parent=0 // pred_region
    _
  $region57: #{cross_modal_forward.1} parent=0 // pred_fallthru
    _
  // Predicated region
  $region58: #{cross_modal_forward.1} parent=0 // pred_check
    _
  $region59: #{cross_modal_forward.1} parent=0 // pred_check_branch
    %51 = sbr.rel (0) target = $region61
  $region60: #{cross_modal_forward.1} parent=0 // pred_region
    _
  $region61: #{cross_modal_forward.1} parent=0 // pred_fallthru
    _
  // Predicated region
  $region62: #{cross_modal_forward.1} parent=0 // pred_check
    _
  $region63: #{cross_modal_forward.1} parent=0 // pred_check_branch
    %53 = sbr.rel (0) target = $region65
  $region64: #{cross_modal_forward.1} parent=0 // pred_region
    _
  $region65: #{cross_modal_forward.1} parent=0 // pred_fallthru
    _
  // Predicated region
  $region66: #{cross_modal_forward.1} parent=0 // pred_check
    _
  $region67: #{cross_modal_forward.1} parent=0 // pred_check_branch
    %55 = sbr.rel (0) target = $region69
  $region68: #{cross_modal_forward.1} parent=0 // pred_region
    _
  $region69: #{cross_modal_forward.1} parent=0 // pred_fallthru
    _
  %v57 = vld [vmem:[%s0] sm:$0xf]
  %v58 = vld [vmem:[%s4] sm:$0xf]
  %v59 = vld [vmem:[%s4 + $0x4] sm:$0xf]
  %v60 = vld [vmem:[%s4 + $0x8] sm:$0xf]
  %v61 = vld [vmem:[%s4 + $0xc] sm:$0xf]
  %v62 = vld [vmem:[%s5] sm:$0x1]
  %v64 = vlaneseq
  %v65 = vshrl.u32 %v64, 7
  %v66 = vsub.s32 0, %v65
  %v67 = vrot.slane %v62, %v66
  %v73 = vunpack.c.l.b16 %v58
  %v74 = vunpack.c.l.b16 %v59
  %v75 = vunpack.c.l.b16 %v60
  %v76 = vunpack.c.l.b16 %v61
  %v77 = vpack.c.b16 %v74, %v73
  %v78 = vpack.c.b16 %v76, %v75
  %vm81 = vcmask 261120
  %v83 = vsel %vm81, %v57, 0
  %85 = vmatprep.subr.bf16.mxu0 0
  %86 = vmatpush1.bf16.msra.mxu0 %v77
  %87 = vmatprep.subr.bf16.mxu0 0
  %88 = vmatpush1.bf16.msra.mxu0 %v78
  %89 = vmatprep.subr.bf16.mxu0 0
  %90 = vmatpush1.bf16.msra.mxu0 0
  %91 = vmatprep.subr.bf16.mxu0 0
  %92 = vmatpush1.bf16.msra.mxu0 0
  %93 = vmatprep.subr.bf16.mxu0 0
  %94 = vmatpush1.bf16.msra.mxu0 0
  %95 = vmatprep.subr.bf16.mxu0 0
  %96 = vmatpush1.bf16.msra.mxu0 0
  %97 = vmatprep.subr.bf16.mxu0 0
  %98 = vmatpush1.bf16.msra.mxu0 0
  %99 = vmatprep.subr.bf16.mxu0 0
  %100 = vmatpush1.bf16.msra.mxu0 0
  %101 = vmatprep.subr.bf16.mxu0 0
  %102 = vmatpush1.bf16.msra.mxu0 0
  %103 = vmatprep.subr.bf16.mxu0 0
  %104 = vmatpush1.bf16.msra.mxu0 0
  %105 = vmatprep.subr.bf16.mxu0 0
  %106 = vmatpush1.bf16.msra.mxu0 0
  %107 = vmatprep.subr.bf16.mxu0 0
  %108 = vmatpush1.bf16.msra.mxu0 0
  %109 = vmatprep.subr.bf16.mxu0 0
  %110 = vmatpush1.bf16.msra.mxu0 0
  %111 = vmatprep.subr.bf16.mxu0 0
  %112 = vmatpush1.bf16.msra.mxu0 0
  %113 = vmatprep.subr.bf16.mxu0 0
  %114 = vmatpush1.bf16.msra.mxu0 0
  %115 = vmatprep.subr.bf16.mxu0 0
  %116 = vmatpush1.bf16.msra.mxu0 0
  %117 = vmatprep.mubr.bf16.mxu0 0
  %118 = vmatmul.mubr.bf16.gmra.mrb[0].mxu0 %v83
  %v119 = vpop.f32.mrb[0].mxu0
  %v120 = vadd.f32 %v67, %v119
  %v121 = vpop.f32.mrb[0].mxu0
  %v122 = vpop.f32.mrb[0].mxu0
  %v123 = vpop.f32.mrb[0].mxu0
  %124 = vdwg.mxu0
  %v125 = vmul.f32 %v120, %v120
  %v126 = vmul.f32 %v120, %v125
  %v127 = vmul.f32 %v126, 0.044715
  %v128 = vadd.f32 %v120, %v127
  %v129 = vmul.f32 %v128, 0.7978846
  %v130 = vtanh.pop %v129
  %v131 = vadd.f32 %v130, 1.0
  %v132 = vmul.f32 %v131, 0.5
  %v133 = vmul.f32 %v120, %v132
  %v134 = vld [vmem:[%s1] sm:$0xf]
  %v135 = vld [vmem:[%s1 + $0x4] sm:$0xf]
  %v136 = vld [vmem:[%s1 + $0x8] sm:$0xf]
  %v137 = vld [vmem:[%s1 + $0xc] sm:$0xf]
  %v138 = vld [vmem:[%s1 + $0x10] sm:$0xf]
  %v139 = vld [vmem:[%s1 + $0x14] sm:$0xf]
  %v140 = vld [vmem:[%s1 + $0x18] sm:$0xf]
  %v141 = vld [vmem:[%s1 + $0x1c] sm:$0xf]
  %v142 = vld [vmem:[%s1 + $0x20] sm:$0xf]
  %v143 = vld [vmem:[%s1 + $0x24] sm:$0xf]
  %v144 = vld [vmem:[%s1 + $0x28] sm:$0xf]
  %v145 = vld [vmem:[%s1 + $0x2c] sm:$0xf]
  %v146 = vld [vmem:[%s1 + $0x30] sm:$0xf]
  %v147 = vld [vmem:[%s1 + $0x34] sm:$0xf]
  %v148 = vld [vmem:[%s1 + $0x38] sm:$0xf]
  %v149 = vld [vmem:[%s1 + $0x3c] sm:$0xf]
  %v150 = vld [vmem:[%s1 + $0x40] sm:$0xf]
  %v151 = vld [vmem:[%s1 + $0x44] sm:$0xf]
  %v152 = vld [vmem:[%s1 + $0x48] sm:$0xf]
  %v153 = vld [vmem:[%s1 + $0x4c] sm:$0xf]
  %v154 = vld [vmem:[%s1 + $0x50] sm:$0xf]
  %v155 = vld [vmem:[%s1 + $0x54] sm:$0xf]
  %v156 = vld [vmem:[%s1 + $0x58] sm:$0xf]
  %v157 = vld [vmem:[%s1 + $0x5c] sm:$0xf]
  %v158 = vld [vmem:[%s1 + $0x60] sm:$0xf]
  %v159 = vld [vmem:[%s1 + $0x64] sm:$0xf]
  %v160 = vld [vmem:[%s1 + $0x68] sm:$0xf]
  %v161 = vld [vmem:[%s1 + $0x6c] sm:$0xf]
  %v162 = vld [vmem:[%s1 + $0x70] sm:$0xf]
  %v163 = vld [vmem:[%s1 + $0x74] sm:$0xf]
  %v164 = vld [vmem:[%s1 + $0x78] sm:$0xf]
  %v165 = vld [vmem:[%s1 + $0x7c] sm:$0xf]
  %v166 = vld [vmem:[%s1 + $0x80] sm:$0xf]
  %v167 = vld [vmem:[%s1 + $0x84] sm:$0xf]
  %v168 = vld [vmem:[%s1 + $0x88] sm:$0xf]
  %v169 = vld [vmem:[%s1 + $0x8c] sm:$0xf]
  %v170 = vld [vmem:[%s1 + $0x90] sm:$0xf]
  %v171 = vld [vmem:[%s1 + $0x94] sm:$0xf]
  %v172 = vld [vmem:[%s1 + $0x98] sm:$0xf]
  %v173 = vld [vmem:[%s1 + $0x9c] sm:$0xf]
  %v174 = vld [vmem:[%s1 + $0xa0] sm:$0xf]
  %v175 = vld [vmem:[%s1 + $0xa4] sm:$0xf]
  %v176 = vld [vmem:[%s1 + $0xa8] sm:$0xf]
  %v177 = vld [vmem:[%s1 + $0xac] sm:$0xf]
  %v178 = vld [vmem:[%s1 + $0xb0] sm:$0xf]
  %v179 = vld [vmem:[%s1 + $0xb4] sm:$0xf]
  %v180 = vld [vmem:[%s1 + $0xb8] sm:$0xf]
  %v181 = vld [vmem:[%s1 + $0xbc] sm:$0xf]
  %v182 = vld [vmem:[%s1 + $0xc0] sm:$0xf]
  %v183 = vld [vmem:[%s1 + $0xc4] sm:$0xf]
  %v184 = vld [vmem:[%s1 + $0xc8] sm:$0xf]
  %v185 = vld [vmem:[%s1 + $0xcc] sm:$0xf]
  %v186 = vld [vmem:[%s1 + $0xd0] sm:$0xf]
  %v187 = vld [vmem:[%s1 + $0xd4] sm:$0xf]
  %v188 = vld [vmem:[%s1 + $0xd8] sm:$0xf]
  %v189 = vld [vmem:[%s1 + $0xdc] sm:$0xf]
  %v190 = vld [vmem:[%s1 + $0xe0] sm:$0xf]
  %v191 = vld [vmem:[%s1 + $0xe4] sm:$0xf]
  %v192 = vld [vmem:[%s1 + $0xe8] sm:$0xf]
  %v193 = vld [vmem:[%s1 + $0xec] sm:$0xf]
  %v194 = vld [vmem:[%s1 + $0xf0] sm:$0xf]
  %v195 = vld [vmem:[%s1 + $0xf4] sm:$0xf]
  %v196 = vld [vmem:[%s1 + $0xf8] sm:$0xf]
  %v197 = vld [vmem:[%s1 + $0xfc] sm:$0xf]
  %v198 = vld [vmem:[%s6] sm:$0xf]
  %v199 = vld [vmem:[%s6 + $0x4] sm:$0xf]
  %v200 = vld [vmem:[%s6 + $0x8] sm:$0xf]
  %v201 = vld [vmem:[%s6 + $0xc] sm:$0xf]
  %v202 = vld [vmem:[%s6 + $0x10] sm:$0x3]
  %v203 = vld [vmem:[%s7] sm:$0x1]
  %v205 = vlaneseq
  %v206 = vshrl.u32 %v205, 7
  %v207 = vsub.s32 0, %v206
  %v208 = vrot.slane %v203, %v207
  %v274 = vunpack.c.l.b16 %v134
  %v275 = vunpack.c.l.b16 %v135
  %v276 = vunpack.c.l.b16 %v136
  %v277 = vunpack.c.l.b16 %v137
  %v278 = vunpack.c.l.b16 %v138
  %v279 = vunpack.c.l.b16 %v139
  %v280 = vunpack.c.l.b16 %v140
  %v281 = vunpack.c.l.b16 %v141
  %v282 = vunpack.c.l.b16 %v142
  %v283 = vunpack.c.l.b16 %v143
  %v284 = vunpack.c.l.b16 %v144
  %v285 = vunpack.c.l.b16 %v145
  %v286 = vunpack.c.l.b16 %v146
  %v287 = vunpack.c.l.b16 %v147
  %v288 = vunpack.c.l.b16 %v148
  %v289 = vunpack.c.l.b16 %v149
  %v290 = vunpack.c.l.b16 %v150
  %v291 = vunpack.c.l.b16 %v151
  %v292 = vunpack.c.l.b16 %v152
  %v293 = vunpack.c.l.b16 %v153
  %v294 = vunpack.c.l.b16 %v154
  %v295 = vunpack.c.l.b16 %v155
  %v296 = vunpack.c.l.b16 %v156
  %v297 = vunpack.c.l.b16 %v157
  %v298 = vunpack.c.l.b16 %v158
  %v299 = vunpack.c.l.b16 %v159
  %v300 = vunpack.c.l.b16 %v160
  %v301 = vunpack.c.l.b16 %v161
  %v302 = vunpack.c.l.b16 %v162
  %v303 = vunpack.c.l.b16 %v163
  %v304 = vunpack.c.l.b16 %v164
  %v305 = vunpack.c.l.b16 %v165
  %v306 = vunpack.c.l.b16 %v166
  %v307 = vunpack.c.l.b16 %v167
  %v308 = vunpack.c.l.b16 %v168
  %v309 = vunpack.c.l.b16 %v169
  %v310 = vunpack.c.l.b16 %v170
  %v311 = vunpack.c.l.b16 %v171
  %v312 = vunpack.c.l.b16 %v172
  %v313 = vunpack.c.l.b16 %v173
  %v314 = vunpack.c.l.b16 %v174
  %v315 = vunpack.c.l.b16 %v175
  %v316 = vunpack.c.l.b16 %v176
  %v317 = vunpack.c.l.b16 %v177
  %v318 = vunpack.c.l.b16 %v178
  %v319 = vunpack.c.l.b16 %v179
  %v320 = vunpack.c.l.b16 %v180
  %v321 = vunpack.c.l.b16 %v181
  %v322 = vunpack.c.l.b16 %v182
  %v323 = vunpack.c.l.b16 %v183
  %v324 = vunpack.c.l.b16 %v184
  %v325 = vunpack.c.l.b16 %v185
  %v326 = vunpack.c.l.b16 %v186
  %v327 = vunpack.c.l.b16 %v187
  %v328 = vunpack.c.l.b16 %v188
  %v329 = vunpack.c.l.b16 %v189
  %v330 = vunpack.c.l.b16 %v190
  %v331 = vunpack.c.l.b16 %v191
  %v332 = vunpack.c.l.b16 %v192
  %v333 = vunpack.c.l.b16 %v193
  %v334 = vunpack.c.l.b16 %v194
  %v335 = vunpack.c.l.b16 %v195
  %v336 = vunpack.c.l.b16 %v196
  %v337 = vunpack.c.l.b16 %v197
  %v338 = vpack.c.b16 %v275, %v274
  %v339 = vpack.c.b16 %v277, %v276
  %v340 = vpack.c.b16 %v279, %v278
  %v341 = vpack.c.b16 %v281, %v280
  %v342 = vpack.c.b16 %v283, %v282
  %v343 = vpack.c.b16 %v285, %v284
  %v344 = vpack.c.b16 %v287, %v286
  %v345 = vpack.c.b16 %v289, %v288
  %v346 = vpack.c.b16 %v291, %v290
  %v347 = vpack.c.b16 %v293, %v292
  %v348 = vpack.c.b16 %v295, %v294
  %v349 = vpack.c.b16 %v297, %v296
  %v350 = vpack.c.b16 %v299, %v298
  %v351 = vpack.c.b16 %v301, %v300
  %v352 = vpack.c.b16 %v303, %v302
  %v353 = vpack.c.b16 %v305, %v304
  %v354 = vpack.c.b16 %v307, %v306
  %v355 = vpack.c.b16 %v309, %v308
  %v356 = vpack.c.b16 %v311, %v310
  %v357 = vpack.c.b16 %v313, %v312
  %v358 = vpack.c.b16 %v315, %v314
  %v359 = vpack.c.b16 %v317, %v316
  %v360 = vpack.c.b16 %v319, %v318
  %v361 = vpack.c.b16 %v321, %v320
  %v362 = vpack.c.b16 %v323, %v322
  %v363 = vpack.c.b16 %v325, %v324
  %v364 = vpack.c.b16 %v327, %v326
  %v365 = vpack.c.b16 %v329, %v328
  %v366 = vpack.c.b16 %v331, %v330
  %v367 = vpack.c.b16 %v333, %v332
  %v368 = vpack.c.b16 %v335, %v334
  %v369 = vpack.c.b16 %v337, %v336
  %v375 = vunpack.c.l.b16 %v198
  %v376 = vunpack.c.l.b16 %v199
  %v377 = vunpack.c.l.b16 %v200
  %v378 = vunpack.c.l.b16 %v201
  %v379 = vunpack.c.l.b16 %v202
  %v380 = vpack.c.b16 %v376, %v375
  %v381 = vpack.c.b16 %v378, %v377
  %v382 = vpack.c.b16 %v379, %v379
  %vm385 = vcmask 293888
  %v387 = vsel %vm385, %v338, 0
  %v390 = vsel %vm385, %v339, 0
  %v393 = vsel %vm385, %v340, 0
  %v396 = vsel %vm385, %v341, 0
  %v399 = vsel %vm385, %v342, 0
  %v402 = vsel %vm385, %v343, 0
  %v405 = vsel %vm385, %v344, 0
  %v408 = vsel %vm385, %v345, 0
  %v411 = vsel %vm385, %v346, 0
  %v414 = vsel %vm385, %v347, 0
  %v417 = vsel %vm385, %v348, 0
  %v420 = vsel %vm385, %v349, 0
  %v423 = vsel %vm385, %v350, 0
  %v426 = vsel %vm385, %v351, 0
  %v429 = vsel %vm385, %v352, 0
  %v432 = vsel %vm385, %v353, 0
  %v435 = vsel %vm385, %v354, 0
  %v438 = vsel %vm385, %v355, 0
  %v441 = vsel %vm385, %v356, 0
  %v444 = vsel %vm385, %v357, 0
  %v447 = vsel %vm385, %v358, 0
  %v450 = vsel %vm385, %v359, 0
  %v453 = vsel %vm385, %v360, 0
  %v456 = vsel %vm385, %v361, 0
  %v459 = vsel %vm385, %v362, 0
  %v462 = vsel %vm385, %v363, 0
  %v465 = vsel %vm385, %v364, 0
  %v468 = vsel %vm385, %v365, 0
  %v471 = vsel %vm385, %v366, 0
  %v474 = vsel %vm385, %v367, 0
  %v477 = vsel %vm385, %v368, 0
  %v480 = vsel %vm385, %v369, 0
  %vm482 = vcmask 1041408
  %v484 = vsel %vm482, %v382, 0
  %486 = vmatprep.subr.bf16.mxu0 0
  %487 = vmatpush1.bf16.msra.mxu0 %v380
  %488 = vmatprep.subr.bf16.mxu0 0
  %489 = vmatpush1.bf16.msra.mxu0 %v381
  %490 = vmatprep.subr.bf16.mxu0 0
  %491 = vmatpush1.bf16.msra.mxu0 %v484
  %492 = vmatprep.subr.bf16.mxu0 0
  %493 = vmatpush1.bf16.msra.mxu0 0
  %494 = vmatprep.subr.bf16.mxu0 0
  %495 = vmatpush1.bf16.msra.mxu0 0
  %496 = vmatprep.subr.bf16.mxu0 0
  %497 = vmatpush1.bf16.msra.mxu0 0
  %498 = vmatprep.subr.bf16.mxu0 0
  %499 = vmatpush1.bf16.msra.mxu0 0
  %500 = vmatprep.subr.bf16.mxu0 0
  %501 = vmatpush1.bf16.msra.mxu0 0
  %502 = vmatprep.subr.bf16.mxu0 0
  %503 = vmatpush1.bf16.msra.mxu0 0
  %504 = vmatprep.subr.bf16.mxu0 0
  %505 = vmatpush1.bf16.msra.mxu0 0
  %506 = vmatprep.subr.bf16.mxu0 0
  %507 = vmatpush1.bf16.msra.mxu0 0
  %508 = vmatprep.subr.bf16.mxu0 0
  %509 = vmatpush1.bf16.msra.mxu0 0
  %510 = vmatprep.subr.bf16.mxu0 0
  %511 = vmatpush1.bf16.msra.mxu0 0
  %512 = vmatprep.subr.bf16.mxu0 0
  %513 = vmatpush1.bf16.msra.mxu0 0
  %514 = vmatprep.subr.bf16.mxu0 0
  %515 = vmatpush1.bf16.msra.mxu0 0
  %516 = vmatprep.subr.bf16.mxu0 0
  %517 = vmatpush1.bf16.msra.mxu0 0
  %518 = vmatprep.mubr.bf16.mxu0 0
  %519 = vmatmul.mubr.bf16.gmra.mrb[0].mxu0 %v387
  %v520 = vpop.f32.mrb[0].mxu0
  %v521 = vadd.f32 %v208, %v520
  %v522 = vpop.f32.mrb[0].mxu0
  %v523 = vpop.f32.mrb[0].mxu0
  %v524 = vadd.f32 %v208, %v523
  %v525 = vpop.f32.mrb[0].mxu0
  %526 = vmatprep.mubr.bf16.mxu0 0
  %527 = vmatmul.mubr.bf16.gmra.mrb[0].mxu0 %v390
  %v528 = vpop.f32.mrb[0].mxu0
  %v529 = vadd.f32 %v208, %v528
  %v530 = vpop.f32.mrb[0].mxu0
  %v531 = vpop.f32.mrb[0].mxu0
  %v532 = vadd.f32 %v208, %v531
  %v533 = vpop.f32.mrb[0].mxu0
  %534 = vmatprep.mubr.bf16.mxu0 0
  %535 = vmatmul.mubr.bf16.gmra.mrb[0].mxu0 %v393
  %v536 = vpop.f32.mrb[0].mxu0
  %v537 = vadd.f32 %v208, %v536
  %v538 = vpop.f32.mrb[0].mxu0
  %v539 = vpop.f32.mrb[0].mxu0
  %v540 = vadd.f32 %v208, %v539
  %v541 = vpop.f32.mrb[0].mxu0
  %542 = vmatprep.mubr.bf16.mxu0 0
  %543 = vmatmul.mubr.bf16.gmra.mrb[0].mxu0 %v396
  %v544 = vpop.f32.mrb[0].mxu0
  %v545 = vadd.f32 %v208, %v544
  %v546 = vpop.f32.mrb[0].mxu0
  %v547 = vpop.f32.mrb[0].mxu0
  %v548 = vadd.f32 %v208, %v547
  %v549 = vpop.f32.mrb[0].mxu0
  %550 = vmatprep.mubr.bf16.mxu0 0
  %551 = vmatmul.mubr.bf16.gmra.mrb[0].mxu0 %v399
  %v552 = vpop.f32.mrb[0].mxu0
  %v553 = vadd.f32 %v208, %v552
  %v554 = vpop.f32.mrb[0].mxu0
  %v555 = vpop.f32.mrb[0].mxu0
  %v556 = vadd.f32 %v208, %v555
  %v557 = vpop.f32.mrb[0].mxu0
  %558 = vmatprep.mubr.bf16.mxu0 0
  %559 = vmatmul.mubr.bf16.gmra.mrb[0].mxu0 %v402
  %v560 = vpop.f32.mrb[0].mxu0
  %v561 = vadd.f32 %v208, %v560
  %v562 = vpop.f32.mrb[0].mxu0
  %v563 = vpop.f32.mrb[0].mxu0
  %v564 = vadd.f32 %v208, %v563
  %v565 = vpop.f32.mrb[0].mxu0
  %566 = vmatprep.mubr.bf16.mxu0 0
  %567 = vmatmul.mubr.bf16.gmra.mrb[0].mxu0 %v405
  %v568 = vpop.f32.mrb[0].mxu0
  %v569 = vadd.f32 %v208, %v568
  %v570 = vpop.f32.mrb[0].mxu0
  %v571 = vpop.f32.mrb[0].mxu0
  %v572 = vadd.f32 %v208, %v571
  %v573 = vpop.f32.mrb[0].mxu0
  %574 = vmatprep.mubr.bf16.mxu0 0
  %575 = vmatmul.mubr.bf16.gmra.mrb[0].mxu0 %v408
  %v576 = vpop.f32.mrb[0].mxu0
  %v577 = vadd.f32 %v208, %v576
  %v578 = vpop.f32.mrb[0].mxu0
  %v579 = vpop.f32.mrb[0].mxu0
  %v580 = vadd.f32 %v208, %v579
  %v581 = vpop.f32.mrb[0].mxu0
  %582 = vmatprep.mubr.bf16.mxu0 0
  %583 = vmatmul.mubr.bf16.gmra.mrb[0].mxu0 %v411
  %v584 = vpop.f32.mrb[0].mxu0
  %v585 = vadd.f32 %v208, %v584
  %v586 = vpop.f32.mrb[0].mxu0
  %v587 = vpop.f32.mrb[0].mxu0
  %v588 = vadd.f32 %v208, %v587
  %v589 = vpop.f32.mrb[0].mxu0
  %590 = vmatprep.mubr.bf16.mxu0 0
  %591 = vmatmul.mubr.bf16.gmra.mrb[0].mxu0 %v414
  %v592 = vpop.f32.mrb[0].mxu0
  %v593 = vadd.f32 %v208, %v592
  %v594 = vpop.f32.mrb[0].mxu0
  %v595 = vpop.f32.mrb[0].mxu0
  %v596 = vadd.f32 %v208, %v595
  %v597 = vpop.f32.mrb[0].mxu0
  %598 = vmatprep.mubr.bf16.mxu0 0
  %599 = vmatmul.mubr.bf16.gmra.mrb[0].mxu0 %v417
  %v600 = vpop.f32.mrb[0].mxu0
  %v601 = vadd.f32 %v208, %v600
  %v602 = vpop.f32.mrb[0].mxu0
  %v603 = vpop.f32.mrb[0].mxu0
  %v604 = vadd.f32 %v208, %v603
  %v605 = vpop.f32.mrb[0].mxu0
  %606 = vmatprep.mubr.bf16.mxu0 0
  %607 = vmatmul.mubr.bf16.gmra.mrb[0].mxu0 %v420
  %v608 = vpop.f32.mrb[0].mxu0
  %v609 = vadd.f32 %v208, %v608
  %v610 = vpop.f32.mrb[0].mxu0
  %v611 = vpop.f32.mrb[0].mxu0
  %v612 = vadd.f32 %v208, %v611
  %v613 = vpop.f32.mrb[0].mxu0
  %614 = vmatprep.mubr.bf16.mxu0 0
  %615 = vmatmul.mubr.bf16.gmra.mrb[0].mxu0 %v423
  %v616 = vpop.f32.mrb[0].mxu0
  %v617 = vadd.f32 %v208, %v616
  %v618 = vpop.f32.mrb[0].mxu0
  %v619 = vpop.f32.mrb[0].mxu0
  %v620 = vadd.f32 %v208, %v619
  %v621 = vpop.f32.mrb[0].mxu0
  %622 = vmatprep.mubr.bf16.mxu0 0
  %623 = vmatmul.mubr.bf16.gmra.mrb[0].mxu0 %v426
  %v624 = vpop.f32.mrb[0].mxu0
  %v625 = vadd.f32 %v208, %v624
  %v626 = vpop.f32.mrb[0].mxu0
  %v627 = vpop.f32.mrb[0].mxu0
  %v628 = vadd.f32 %v208, %v627
  %v629 = vpop.f32.mrb[0].mxu0
  %630 = vmatprep.mubr.bf16.mxu0 0
  %631 = vmatmul.mubr.bf16.gmra.mrb[0].mxu0 %v429
  %v632 = vpop.f32.mrb[0].mxu0
  %v633 = vadd.f32 %v208, %v632
  %v634 = vpop.f32.mrb[0].mxu0
  %v635 = vpop.f32.mrb[0].mxu0
  %v636 = vadd.f32 %v208, %v635
  %v637 = vpop.f32.mrb[0].mxu0
  %638 = vmatprep.mubr.bf16.mxu0 0
  %639 = vmatmul.mubr.bf16.gmra.mrb[0].mxu0 %v432
  %v640 = vpop.f32.mrb[0].mxu0
  %v641 = vadd.f32 %v208, %v640
  %v642 = vpop.f32.mrb[0].mxu0
  %v643 = vpop.f32.mrb[0].mxu0
  %v644 = vadd.f32 %v208, %v643
  %v645 = vpop.f32.mrb[0].mxu0
  %646 = vmatprep.mubr.bf16.mxu0 0
  %647 = vmatmul.mubr.bf16.gmra.mrb[0].mxu0 %v435
  %v648 = vpop.f32.mrb[0].mxu0
  %v649 = vadd.f32 %v208, %v648
  %v650 = vpop.f32.mrb[0].mxu0
  %v651 = vpop.f32.mrb[0].mxu0
  %v652 = vadd.f32 %v208, %v651
  %v653 = vpop.f32.mrb[0].mxu0
  %654 = vmatprep.mubr.bf16.mxu0 0
  %655 = vmatmul.mubr.bf16.gmra.mrb[0].mxu0 %v438
  %v656 = vpop.f32.mrb[0].mxu0
  %v657 = vadd.f32 %v208, %v656
  %v658 = vpop.f32.mrb[0].mxu0
  %v659 = vpop.f32.mrb[0].mxu0
  %v660 = vadd.f32 %v208, %v659
  %v661 = vpop.f32.mrb[0].mxu0
  %662 = vmatprep.mubr.bf16.mxu0 0
  %663 = vmatmul.mubr.bf16.gmra.mrb[0].mxu0 %v441
  %v664 = vpop.f32.mrb[0].mxu0
  %v665 = vadd.f32 %v208, %v664
  %v666 = vpop.f32.mrb[0].mxu0
  %v667 = vpop.f32.mrb[0].mxu0
  %v668 = vadd.f32 %v208, %v667
  %v669 = vpop.f32.mrb[0].mxu0
  %670 = vmatprep.mubr.bf16.mxu0 0
  %671 = vmatmul.mubr.bf16.gmra.mrb[0].mxu0 %v444
  %v672 = vpop.f32.mrb[0].mxu0
  %v673 = vadd.f32 %v208, %v672
  %v674 = vpop.f32.mrb[0].mxu0
  %v675 = vpop.f32.mrb[0].mxu0
  %v676 = vadd.f32 %v208, %v675
  %v677 = vpop.f32.mrb[0].mxu0
  %678 = vmatprep.mubr.bf16.mxu0 0
  %679 = vmatmul.mubr.bf16.gmra.mrb[0].mxu0 %v447
  %v680 = vpop.f32.mrb[0].mxu0
  %v681 = vadd.f32 %v208, %v680
  %v682 = vpop.f32.mrb[0].mxu0
  %v683 = vpop.f32.mrb[0].mxu0
  %v684 = vadd.f32 %v208, %v683
  %v685 = vpop.f32.mrb[0].mxu0
  %686 = vmatprep.mubr.bf16.mxu0 0
  %687 = vmatmul.mubr.bf16.gmra.mrb[0].mxu0 %v450
  %v688 = vpop.f32.mrb[0].mxu0
  %v689 = vadd.f32 %v208, %v688
  %v690 = vpop.f32.mrb[0].mxu0
  %v691 = vpop.f32.mrb[0].mxu0
  %v692 = vadd.f32 %v208, %v691
  %v693 = vpop.f32.mrb[0].mxu0
  %694 = vmatprep.mubr.bf16.mxu0 0
  %695 = vmatmul.mubr.bf16.gmra.mrb[0].mxu0 %v453
  %v696 = vpop.f32.mrb[0].mxu0
  %v697 = vadd.f32 %v208, %v696
  %v698 = vpop.f32.mrb[0].mxu0
  %v699 = vpop.f32.mrb[0].mxu0
  %v700 = vadd.f32 %v208, %v699
  %v701 = vpop.f32.mrb[0].mxu0
  %702 = vmatprep.mubr.bf16.mxu0 0
  %703 = vmatmul.mubr.bf16.gmra.mrb[0].mxu0 %v456
  %v704 = vpop.f32.mrb[0].mxu0
  %v705 = vadd.f32 %v208, %v704
  %v706 = vpop.f32.mrb[0].mxu0
  %v707 = vpop.f32.mrb[0].mxu0
  %v708 = vadd.f32 %v208, %v707
  %v709 = vpop.f32.mrb[0].mxu0
  %710 = vmatprep.mubr.bf16.mxu0 0
  %711 = vmatmul.mubr.bf16.gmra.mrb[0].mxu0 %v459
  %v712 = vpop.f32.mrb[0].mxu0
  %v713 = vadd.f32 %v208, %v712
  %v714 = vpop.f32.mrb[0].mxu0
  %v715 = vpop.f32.mrb[0].mxu0
  %v716 = vadd.f32 %v208, %v715
  %v717 = vpop.f32.mrb[0].mxu0
  %718 = vmatprep.mubr.bf16.mxu0 0
  %719 = vmatmul.mubr.bf16.gmra.mrb[0].mxu0 %v462
  %v720 = vpop.f32.mrb[0].mxu0
  %v721 = vadd.f32 %v208, %v720
  %v722 = vpop.f32.mrb[0].mxu0
  %v723 = vpop.f32.mrb[0].mxu0
  %v724 = vadd.f32 %v208, %v723
  %v725 = vpop.f32.mrb[0].mxu0
  %726 = vmatprep.mubr.bf16.mxu0 0
  %727 = vmatmul.mubr.bf16.gmra.mrb[0].mxu0 %v465
  %v728 = vpop.f32.mrb[0].mxu0
  %v729 = vadd.f32 %v208, %v728
  %v730 = vpop.f32.mrb[0].mxu0
  %v731 = vpop.f32.mrb[0].mxu0
  %v732 = vadd.f32 %v208, %v731
  %v733 = vpop.f32.mrb[0].mxu0
  %734 = vmatprep.mubr.bf16.mxu0 0
  %735 = vmatmul.mubr.bf16.gmra.mrb[0].mxu0 %v468
  %v736 = vpop.f32.mrb[0].mxu0
  %v737 = vadd.f32 %v208, %v736
  %v738 = vpop.f32.mrb[0].mxu0
  %v739 = vpop.f32.mrb[0].mxu0
  %v740 = vadd.f32 %v208, %v739
  %v741 = vpop.f32.mrb[0].mxu0
  %742 = vmatprep.mubr.bf16.mxu0 0
  %743 = vmatmul.mubr.bf16.gmra.mrb[0].mxu0 %v471
  %v744 = vpop.f32.mrb[0].mxu0
  %v745 = vadd.f32 %v208, %v744
  %v746 = vpop.f32.mrb[0].mxu0
  %v747 = vpop.f32.mrb[0].mxu0
  %v748 = vadd.f32 %v208, %v747
  %v749 = vpop.f32.mrb[0].mxu0
  %750 = vmatprep.mubr.bf16.mxu0 0
  %751 = vmatmul.mubr.bf16.gmra.mrb[0].mxu0 %v474
  %v752 = vpop.f32.mrb[0].mxu0
  %v753 = vadd.f32 %v208, %v752
  %v754 = vpop.f32.mrb[0].mxu0
  %v755 = vpop.f32.mrb[0].mxu0
  %v756 = vadd.f32 %v208, %v755
  %v757 = vpop.f32.mrb[0].mxu0
  %758 = vmatprep.mubr.bf16.mxu0 0
  %759 = vmatmul.mubr.bf16.gmra.mrb[0].mxu0 %v477
  %v760 = vpop.f32.mrb[0].mxu0
  %v761 = vadd.f32 %v208, %v760
  %v762 = vpop.f32.mrb[0].mxu0
  %v763 = vpop.f32.mrb[0].mxu0
  %v764 = vadd.f32 %v208, %v763
  %v765 = vpop.f32.mrb[0].mxu0
  %766 = vmatprep.mubr.bf16.mxu0 0
  %767 = vmatmul.mubr.bf16.gmra.mrb[0].mxu0 %v480
  %v768 = vpop.f32.mrb[0].mxu0
  %v769 = vadd.f32 %v208, %v768
  %v770 = vpop.f32.mrb[0].mxu0
  %v771 = vpop.f32.mrb[0].mxu0
  %v772 = vadd.f32 %v208, %v771
  %v773 = vpop.f32.mrb[0].mxu0
  %774 = vdwg.mxu0
  %v775 = vmax.f32 %v521, 0.0
  %v776 = vmax.f32 %v524, 0.0
  %v777 = vmax.f32 %v529, 0.0
  %v778 = vmax.f32 %v532, 0.0
  %v779 = vmax.f32 %v537, 0.0
  %v780 = vmax.f32 %v540, 0.0
  %v781 = vmax.f32 %v545, 0.0
  %v782 = vmax.f32 %v548, 0.0
  %v783 = vmax.f32 %v553, 0.0
  %v784 = vmax.f32 %v556, 0.0
  %v785 = vmax.f32 %v561, 0.0
  %v786 = vmax.f32 %v564, 0.0
  %v787 = vmax.f32 %v569, 0.0
  %v788 = vmax.f32 %v572, 0.0
  %v789 = vmax.f32 %v577, 0.0
  %v790 = vmax.f32 %v580, 0.0
  %v791 = vmax.f32 %v585, 0.0
  %v792 = vmax.f32 %v588, 0.0
  %v793 = vmax.f32 %v593, 0.0
  %v794 = vmax.f32 %v596, 0.0
  %v795 = vmax.f32 %v601, 0.0
  %v796 = vmax.f32 %v604, 0.0
  %v797 = vmax.f32 %v609, 0.0
  %v798 = vmax.f32 %v612, 0.0
  %v799 = vmax.f32 %v617, 0.0
  %v800 = vmax.f32 %v620, 0.0
  %v801 = vmax.f32 %v625, 0.0
  %v802 = vmax.f32 %v628, 0.0
  %v803 = vmax.f32 %v633, 0.0
  %v804 = vmax.f32 %v636, 0.0
  %v805 = vmax.f32 %v641, 0.0
  %v806 = vmax.f32 %v644, 0.0
  %v807 = vmax.f32 %v649, 0.0
  %v808 = vmax.f32 %v652, 0.0
  %v809 = vmax.f32 %v657, 0.0
  %v810 = vmax.f32 %v660, 0.0
  %v811 = vmax.f32 %v665, 0.0
  %v812 = vmax.f32 %v668, 0.0
  %v813 = vmax.f32 %v673, 0.0
  %v814 = vmax.f32 %v676, 0.0
  %v815 = vmax.f32 %v681, 0.0
  %v816 = vmax.f32 %v684, 0.0
  %v817 = vmax.f32 %v689, 0.0
  %v818 = vmax.f32 %v692, 0.0
  %v819 = vmax.f32 %v697, 0.0
  %v820 = vmax.f32 %v700, 0.0
  %v821 = vmax.f32 %v705, 0.0
  %v822 = vmax.f32 %v708, 0.0
  %v823 = vmax.f32 %v713, 0.0
  %v824 = vmax.f32 %v716, 0.0
  %v825 = vmax.f32 %v721, 0.0
  %v826 = vmax.f32 %v724, 0.0
  %v827 = vmax.f32 %v729, 0.0
  %v828 = vmax.f32 %v732, 0.0
  %v829 = vmax.f32 %v737, 0.0
  %v830 = vmax.f32 %v740, 0.0
  %v831 = vmax.f32 %v745, 0.0
  %v832 = vmax.f32 %v748, 0.0
  %v833 = vmax.f32 %v753, 0.0
  %v834 = vmax.f32 %v756, 0.0
  %v835 = vmax.f32 %v761, 0.0
  %v836 = vmax.f32 %v764, 0.0
  %v837 = vmax.f32 %v769, 0.0
  %v838 = vmax.f32 %v772, 0.0
  %v839 = vld [vmem:[%s2] sm:$0xff]
  %v840 = vld [vmem:[%s2 + $0x8] sm:$0xff]
  %v841 = vpack.c.bf16 %v776, %v775
  %v842 = vpack.c.bf16 %v778, %v777
  %v843 = vpack.c.bf16 %v780, %v779
  %v844 = vpack.c.bf16 %v782, %v781
  %v845 = vpack.c.bf16 %v784, %v783
  %v846 = vpack.c.bf16 %v786, %v785
  %v847 = vpack.c.bf16 %v788, %v787
  %v848 = vpack.c.bf16 %v790, %v789
  %v849 = vpack.c.bf16 %v792, %v791
  %v850 = vpack.c.bf16 %v794, %v793
  %v851 = vpack.c.bf16 %v796, %v795
  %v852 = vpack.c.bf16 %v798, %v797
  %v853 = vpack.c.bf16 %v800, %v799
  %v854 = vpack.c.bf16 %v802, %v801
  %v855 = vpack.c.bf16 %v804, %v803
  %v856 = vpack.c.bf16 %v806, %v805
  %v857 = vpack.c.bf16 %v808, %v807
  %v858 = vpack.c.bf16 %v810, %v809
  %v859 = vpack.c.bf16 %v812, %v811
  %v860 = vpack.c.bf16 %v814, %v813
  %v861 = vpack.c.bf16 %v816, %v815
  %v862 = vpack.c.bf16 %v818, %v817
  %v863 = vpack.c.bf16 %v820, %v819
  %v864 = vpack.c.bf16 %v822, %v821
  %v865 = vpack.c.bf16 %v824, %v823
  %v866 = vpack.c.bf16 %v826, %v825
  %v867 = vpack.c.bf16 %v828, %v827
  %v868 = vpack.c.bf16 %v830, %v829
  %v869 = vpack.c.bf16 %v832, %v831
  %v870 = vpack.c.bf16 %v834, %v833
  %v871 = vpack.c.bf16 %v836, %v835
  %v872 = vpack.c.bf16 %v838, %v837
  %v875 = vunpack.c.l.b16 %v839
  %v876 = vunpack.c.h.b16 %v839
  %v877 = vunpack.c.l.b16 %v840
  %v878 = vunpack.c.h.b16 %v840
  %v879 = vpack.c.b16 %v875, %v875
  %v880 = vpack.c.b16 %v876, %v876
  %v881 = vpack.c.b16 %v877, %v877
  %v882 = vpack.c.b16 %v878, %v878
  %887 = vmatprep.subr.bf16.mxu0 0
  %888 = vmatpush1.bf16.msra.mxu0 %v841
  %889 = vmatprep.subr.bf16.mxu0 0
  %890 = vmatpush1.bf16.msra.mxu0 %v842
  %891 = vmatprep.subr.bf16.mxu0 0
  %892 = vmatpush1.bf16.msra.mxu0 %v843
  %893 = vmatprep.subr.bf16.mxu0 0
  %894 = vmatpush1.bf16.msra.mxu0 %v844
  %895 = vmatprep.subr.bf16.mxu0 0
  %896 = vmatpush1.bf16.msra.mxu0 %v845
  %897 = vmatprep.subr.bf16.mxu0 0
  %898 = vmatpush1.bf16.msra.mxu0 %v846
  %899 = vmatprep.subr.bf16.mxu0 0
  %900 = vmatpush1.bf16.msra.mxu0 %v847
  %901 = vmatprep.subr.bf16.mxu0 0
  %902 = vmatpush1.bf16.msra.mxu0 %v848
  %903 = vmatprep.subr.bf16.mxu0 0
  %904 = vmatpush1.bf16.msra.mxu0 %v849
  %905 = vmatprep.subr.bf16.mxu0 0
  %906 = vmatpush1.bf16.msra.mxu0 %v850
  %907 = vmatprep.subr.bf16.mxu0 0
  %908 = vmatpush1.bf16.msra.mxu0 %v851
  %909 = vmatprep.subr.bf16.mxu0 0
  %910 = vmatpush1.bf16.msra.mxu0 %v852
  %911 = vmatprep.subr.bf16.mxu0 0
  %912 = vmatpush1.bf16.msra.mxu0 %v853
  %913 = vmatprep.subr.bf16.mxu0 0
  %914 = vmatpush1.bf16.msra.mxu0 %v854
  %915 = vmatprep.subr.bf16.mxu0 0
  %916 = vmatpush1.bf16.msra.mxu0 %v855
  %917 = vmatprep.subr.bf16.mxu0 0
  %918 = vmatpush1.bf16.msra.mxu0 %v856
  %919 = vmatprep.mubr.bf16.mxu0 %v880
  %920 = vmatmul.mubr.bf16.gmra.mrb[0].mxu0 %v879
  %v921 = vpop.f32.mrb[0].mxu0
  %v922 = vadd.f32 0.0, %v921
  %v923 = vpop.f32.mrb[0].mxu0
  %v924 = vpop.f32.mrb[0].mxu0
  %v925 = vpop.f32.mrb[0].mxu0
  %926 = vdwg.mxu0
  %927 = vmatprep.subr.bf16.mxu0 0
  %928 = vmatpush1.bf16.msra.mxu0 %v857
  %929 = vmatprep.subr.bf16.mxu0 0
  %930 = vmatpush1.bf16.msra.mxu0 %v858
  %931 = vmatprep.subr.bf16.mxu0 0
  %932 = vmatpush1.bf16.msra.mxu0 %v859
  %933 = vmatprep.subr.bf16.mxu0 0
  %934 = vmatpush1.bf16.msra.mxu0 %v860
  %935 = vmatprep.subr.bf16.mxu0 0
  %936 = vmatpush1.bf16.msra.mxu0 %v861
  %937 = vmatprep.subr.bf16.mxu0 0
  %938 = vmatpush1.bf16.msra.mxu0 %v862
  %939 = vmatprep.subr.bf16.mxu0 0
  %940 = vmatpush1.bf16.msra.mxu0 %v863
  %941 = vmatprep.subr.bf16.mxu0 0
  %942 = vmatpush1.bf16.msra.mxu0 %v864
  %943 = vmatprep.subr.bf16.mxu0 0
  %944 = vmatpush1.bf16.msra.mxu0 %v865
  %945 = vmatprep.subr.bf16.mxu0 0
  %946 = vmatpush1.bf16.msra.mxu0 %v866
  %947 = vmatprep.subr.bf16.mxu0 0
  %948 = vmatpush1.bf16.msra.mxu0 %v867
  %949 = vmatprep.subr.bf16.mxu0 0
  %950 = vmatpush1.bf16.msra.mxu0 %v868
  %951 = vmatprep.subr.bf16.mxu0 0
  %952 = vmatpush1.bf16.msra.mxu0 %v869
  %953 = vmatprep.subr.bf16.mxu0 0
  %954 = vmatpush1.bf16.msra.mxu0 %v870
  %955 = vmatprep.subr.bf16.mxu0 0
  %956 = vmatpush1.bf16.msra.mxu0 %v871
  %957 = vmatprep.subr.bf16.mxu0 0
  %958 = vmatpush1.bf16.msra.mxu0 %v872
  %959 = vmatprep.mubr.bf16.mxu0 %v882
  %960 = vmatmul.mubr.bf16.gmra.mrb[0].mxu0 %v881
  %v961 = vpop.f32.mrb[0].mxu0
  %v962 = vadd.f32 %v922, %v961
  %v963 = vpop.f32.mrb[0].mxu0
  %v964 = vpop.f32.mrb[0].mxu0
  %v965 = vpop.f32.mrb[0].mxu0
  %966 = vdwg.mxu0
  %v967 = vpack.c.bf16 %v133, %v133
  %v968 = vld [vmem:[%s8] sm:$0xf]
  %v969 = vld [vmem:[%s8 + $0x4] sm:$0xf]
  %v970 = vld [vmem:[%s8 + $0x8] sm:$0xf]
  %v971 = vld [vmem:[%s8 + $0xc] sm:$0xf]
  %v972 = vpack.c.bf16 %v962, %v962
  %v973 = vld [vmem:[%s9] sm:$0xf]
  %v974 = vld [vmem:[%s9 + $0x4] sm:$0xf]
  %v975 = vld [vmem:[%s9 + $0x8] sm:$0xf]
  %v976 = vld [vmem:[%s9 + $0xc] sm:$0xf]
  %v977 = vld [vmem:[%s9 + $0x10] sm:$0xf]
  %v978 = vld [vmem:[%s9 + $0x14] sm:$0xf]
  %v979 = vld [vmem:[%s9 + $0x18] sm:$0xf]
  %v980 = vld [vmem:[%s9 + $0x1c] sm:$0xf]
  %v989 = vunpack.c.l.b16 %v973
  %v990 = vunpack.c.l.b16 %v974
  %v991 = vunpack.c.l.b16 %v975
  %v992 = vunpack.c.l.b16 %v976
  %v993 = vunpack.c.l.b16 %v977
  %v994 = vunpack.c.l.b16 %v978
  %v995 = vunpack.c.l.b16 %v979
  %v996 = vunpack.c.l.b16 %v980
  %v997 = vpack.c.b16 %v990, %v989
  %v998 = vpack.c.b16 %v992, %v991
  %v999 = vpack.c.b16 %v994, %v993
  %v1000 = vpack.c.b16 %v996, %v995
  %vm1005 = vcmask 523264
  %v1007 = vsel %vm1005, %v972, 0
  %1009 = vmatprep.subr.bf16.mxu0 0
  %1010 = vmatpush1.bf16.msra.mxu0 %v997
  %1011 = vmatprep.subr.bf16.mxu0 0
  %1012 = vmatpush1.bf16.msra.mxu0 %v998
  %1013 = vmatprep.subr.bf16.mxu0 0
  %1014 = vmatpush1.bf16.msra.mxu0 %v999
  %1015 = vmatprep.subr.bf16.mxu0 0
  %1016 = vmatpush1.bf16.msra.mxu0 %v1000
  %1017 = vmatprep.subr.bf16.mxu0 0
  %1018 = vmatpush1.bf16.msra.mxu0 0
  %1019 = vmatprep.subr.bf16.mxu0 0
  %1020 = vmatpush1.bf16.msra.mxu0 0
  %1021 = vmatprep.subr.bf16.mxu0 0
  %1022 = vmatpush1.bf16.msra.mxu0 0
  %1023 = vmatprep.subr.bf16.mxu0 0
  %1024 = vmatpush1.bf16.msra.mxu0 0
  %1025 = vmatprep.subr.bf16.mxu0 0
  %1026 = vmatpush1.bf16.msra.mxu0 0
  %1027 = vmatprep.subr.bf16.mxu0 0
  %1028 = vmatpush1.bf16.msra.mxu0 0
  %1029 = vmatprep.subr.bf16.mxu0 0
  %1030 = vmatpush1.bf16.msra.mxu0 0
  %1031 = vmatprep.subr.bf16.mxu0 0
  %1032 = vmatpush1.bf16.msra.mxu0 0
  %1033 = vmatprep.subr.bf16.mxu0 0
  %1034 = vmatpush1.bf16.msra.mxu0 0
  %1035 = vmatprep.subr.bf16.mxu0 0
  %1036 = vmatpush1.bf16.msra.mxu0 0
  %1037 = vmatprep.subr.bf16.mxu0 0
  %1038 = vmatpush1.bf16.msra.mxu0 0
  %1039 = vmatprep.subr.bf16.mxu0 0
  %1040 = vmatpush1.bf16.msra.mxu0 0
  %1041 = vmatprep.mubr.bf16.mxu0 0
  %1042 = vmatmul.mubr.bf16.gmra.mrb[0].mxu0 %v1007
  %v1043 = vpop.f32.mrb[0].mxu0
  %v1044 = vadd.f32 0.0, %v1043
  %v1045 = vpop.f32.mrb[0].mxu0
  %v1046 = vpop.f32.mrb[0].mxu0
  %v1047 = vpop.f32.mrb[0].mxu0
  %1048 = vdwg.mxu0
  %v1053 = vunpack.c.l.b16 %v968
  %v1054 = vunpack.c.l.b16 %v969
  %v1055 = vunpack.c.l.b16 %v970
  %v1056 = vunpack.c.l.b16 %v971
  %v1057 = vpack.c.b16 %v1054, %v1053
  %v1058 = vpack.c.b16 %v1056, %v1055
  %v1062 = vsel %vm81, %v967, 0
  %1064 = vmatprep.subr.bf16.mxu0 0
  %1065 = vmatpush1.bf16.msra.mxu0 %v1057
  %1066 = vmatprep.subr.bf16.mxu0 0
  %1067 = vmatpush1.bf16.msra.mxu0 %v1058
  %1068 = vmatprep.subr.bf16.mxu0 0
  %1069 = vmatpush1.bf16.msra.mxu0 0
  %1070 = vmatprep.subr.bf16.mxu0 0
  %1071 = vmatpush1.bf16.msra.mxu0 0
  %1072 = vmatprep.subr.bf16.mxu0 0
  %1073 = vmatpush1.bf16.msra.mxu0 0
  %1074 = vmatprep.subr.bf16.mxu0 0
  %1075 = vmatpush1.bf16.msra.mxu0 0
  %1076 = vmatprep.subr.bf16.mxu0 0
  %1077 = vmatpush1.bf16.msra.mxu0 0
  %1078 = vmatprep.subr.bf16.mxu0 0
  %1079 = vmatpush1.bf16.msra.mxu0 0
  %1080 = vmatprep.subr.bf16.mxu0 0
  %1081 = vmatpush1.bf16.msra.mxu0 0
  %1082 = vmatprep.subr.bf16.mxu0 0
  %1083 = vmatpush1.bf16.msra.mxu0 0
  %1084 = vmatprep.subr.bf16.mxu0 0
  %1085 = vmatpush1.bf16.msra.mxu0 0
  %1086 = vmatprep.subr.bf16.mxu0 0
  %1087 = vmatpush1.bf16.msra.mxu0 0
  %1088 = vmatprep.subr.bf16.mxu0 0
  %1089 = vmatpush1.bf16.msra.mxu0 0
  %1090 = vmatprep.subr.bf16.mxu0 0
  %1091 = vmatpush1.bf16.msra.mxu0 0
  %1092 = vmatprep.subr.bf16.mxu0 0
  %1093 = vmatpush1.bf16.msra.mxu0 0
  %1094 = vmatprep.subr.bf16.mxu0 0
  %1095 = vmatpush1.bf16.msra.mxu0 0
  %1096 = vmatprep.mubr.bf16.mxu0 0
  %1097 = vmatmul.mubr.bf16.gmra.mrb[0].mxu0 %v1062
  %v1098 = vpop.f32.mrb[0].mxu0
  %v1099 = vadd.f32 %v1044, %v1098
  %v1100 = vpop.f32.mrb[0].mxu0
  %v1101 = vpop.f32.mrb[0].mxu0
  %v1102 = vpop.f32.mrb[0].mxu0
  %1103 = vdwg.mxu0
  %v1104 = vld [vmem:[%s10] sm:$0x1]
  %v1106 = vlaneseq
  %v1107 = vshrl.u32 %v1106, 7
  %v1108 = vsub.s32 0, %v1107
  %v1109 = vrot.slane %v1104, %v1108
  %v1111 = vadd.f32 %v1099, %v1109
  %v1112 = vld [vmem:[%s3] sm:$0x1]
  %v1113 = vpack.c.bf16 %v1111, %v1111
  %v1114 = vld [vmem:[%s11] sm:$0xf]
  %v1115 = vld [vmem:[%s11 + $0x4] sm:$0xf]
  %v1116 = vld [vmem:[%s11 + $0x8] sm:$0xf]
  %v1117 = vld [vmem:[%s11 + $0xc] sm:$0xf]
  %v1122 = vunpack.c.l.b16 %v1114
  %v1123 = vunpack.c.l.b16 %v1115
  %v1124 = vunpack.c.l.b16 %v1116
  %v1125 = vunpack.c.l.b16 %v1117
  %v1126 = vpack.c.b16 %v1123, %v1122
  %v1127 = vpack.c.b16 %v1125, %v1124
  %v1131 = vsel %vm81, %v1113, 0
  %1133 = vmatprep.subr.bf16.mxu0 0
  %1134 = vmatpush1.bf16.msra.mxu0 %v1126
  %1135 = vmatprep.subr.bf16.mxu0 0
  %1136 = vmatpush1.bf16.msra.mxu0 %v1127
  %1137 = vmatprep.subr.bf16.mxu0 0
  %1138 = vmatpush1.bf16.msra.mxu0 0
  %1139 = vmatprep.subr.bf16.mxu0 0
  %1140 = vmatpush1.bf16.msra.mxu0 0
  %1141 = vmatprep.subr.bf16.mxu0 0
  %1142 = vmatpush1.bf16.msra.mxu0 0
  %1143 = vmatprep.subr.bf16.mxu0 0
  %1144 = vmatpush1.bf16.msra.mxu0 0
  %1145 = vmatprep.subr.bf16.mxu0 0
  %1146 = vmatpush1.bf16.msra.mxu0 0
  %1147 = vmatprep.subr.bf16.mxu0 0
  %1148 = vmatpush1.bf16.msra.mxu0 0
  %1149 = vmatprep.subr.bf16.mxu0 0
  %1150 = vmatpush1.bf16.msra.mxu0 0
  %1151 = vmatprep.subr.bf16.mxu0 0
  %1152 = vmatpush1.bf16.msra.mxu0 0
  %1153 = vmatprep.subr.bf16.mxu0 0
  %1154 = vmatpush1.bf16.msra.mxu0 0
  %1155 = vmatprep.subr.bf16.mxu0 0
  %1156 = vmatpush1.bf16.msra.mxu0 0
  %1157 = vmatprep.subr.bf16.mxu0 0
  %1158 = vmatpush1.bf16.msra.mxu0 0
  %1159 = vmatprep.subr.bf16.mxu0 0
  %1160 = vmatpush1.bf16.msra.mxu0 0
  %1161 = vmatprep.subr.bf16.mxu0 0
  %1162 = vmatpush1.bf16.msra.mxu0 0
  %1163 = vmatprep.subr.bf16.mxu0 0
  %1164 = vmatpush1.bf16.msra.mxu0 0
  %1165 = vmatprep.mubr.bf16.mxu0 0
  %1166 = vmatmul.mubr.bf16.gmra.mrb[0].mxu0 %v1131
  %v1167 = vpop.f32.mrb[0].mxu0
  %v1168 = vadd.f32 0.0, %v1167
  %v1169 = vpop.f32.mrb[0].mxu0
  %v1170 = vpop.f32.mrb[0].mxu0
  %v1171 = vpop.f32.mrb[0].mxu0
  %1172 = vdwg.mxu0
  %v1174 = vlaneseq
  %v1175 = vshrl.u32 %v1174, 7
  %v1176 = vsub.s32 0, %v1175
  %v1177 = vrot.slane %v1112, %v1176
  %v1179 = vadd.f32 %v1177, %v1168
  %v1180 = vpack.c.bf16 %v1179, %v1179
  %v1181 = vld [vmem:[%s12] sm:$0xf]
  %v1182 = vld [vmem:[%s12 + $0x4] sm:$0xf]
  %v1183 = vld [vmem:[%s12 + $0x8] sm:$0xf]
  %v1184 = vld [vmem:[%s12 + $0xc] sm:$0xf]
  %v1185 = vld [vmem:[%s13] sm:$0x1]
  %v1187 = vlaneseq
  %v1188 = vshrl.u32 %v1187, 7
  %v1189 = vsub.s32 0, %v1188
  %v1190 = vrot.slane %v1185, %v1189
  %v1196 = vunpack.c.l.b16 %v1181
  %v1197 = vunpack.c.l.b16 %v1182
  %v1198 = vunpack.c.l.b16 %v1183
  %v1199 = vunpack.c.l.b16 %v1184
  %v1200 = vpack.c.b16 %v1197, %v1196
  %v1201 = vpack.c.b16 %v1199, %v1198
  %v1205 = vsel %vm81, %v1180, 0
  %1207 = vmatprep.subr.bf16.mxu0 0
  %1208 = vmatpush1.bf16.msra.mxu0 %v1200
  %1209 = vmatprep.subr.bf16.mxu0 0
  %1210 = vmatpush1.bf16.msra.mxu0 %v1201
  %1211 = vmatprep.subr.bf16.mxu0 0
  %1212 = vmatpush1.bf16.msra.mxu0 0
  %1213 = vmatprep.subr.bf16.mxu0 0
  %1214 = vmatpush1.bf16.msra.mxu0 0
  %1215 = vmatprep.subr.bf16.mxu0 0
  %1216 = vmatpush1.bf16.msra.mxu0 0
  %1217 = vmatprep.subr.bf16.mxu0 0
  %1218 = vmatpush1.bf16.msra.mxu0 0
  %1219 = vmatprep.subr.bf16.mxu0 0
  %1220 = vmatpush1.bf16.msra.mxu0 0
  %1221 = vmatprep.subr.bf16.mxu0 0
  %1222 = vmatpush1.bf16.msra.mxu0 0
  %1223 = vmatprep.subr.bf16.mxu0 0
  %1224 = vmatpush1.bf16.msra.mxu0 0
  %1225 = vmatprep.subr.bf16.mxu0 0
  %1226 = vmatpush1.bf16.msra.mxu0 0
  %1227 = vmatprep.subr.bf16.mxu0 0
  %1228 = vmatpush1.bf16.msra.mxu0 0
  %1229 = vmatprep.subr.bf16.mxu0 0
  %1230 = vmatpush1.bf16.msra.mxu0 0
  %1231 = vmatprep.subr.bf16.mxu0 0
  %1232 = vmatpush1.bf16.msra.mxu0 0
  %1233 = vmatprep.subr.bf16.mxu0 0
  %1234 = vmatpush1.bf16.msra.mxu0 0
  %1235 = vmatprep.subr.bf16.mxu0 0
  %1236 = vmatpush1.bf16.msra.mxu0 0
  %1237 = vmatprep.subr.bf16.mxu0 0
  %1238 = vmatpush1.bf16.msra.mxu0 0
  %1239 = vmatprep.mubr.bf16.mxu0 0
  %1240 = vmatmul.mubr.bf16.gmra.mrb[0].mxu0 %v1205
  %v1241 = vpop.f32.mrb[0].mxu0
  %v1242 = vadd.f32 %v1190, %v1241
  %v1243 = vpop.f32.mrb[0].mxu0
  %v1244 = vpop.f32.mrb[0].mxu0
  %v1245 = vpop.f32.mrb[0].mxu0
  %1246 = vdwg.mxu0
  %v1247 = vmul.f32 %v1242, %v1242
  %v1248 = vmul.f32 %v1242, %v1247
  %v1249 = vmul.f32 %v1248, 0.044715
  %v1250 = vadd.f32 %v1242, %v1249
  %v1251 = vmul.f32 %v1250, 0.7978846
  %v1252 = vtanh.pop %v1251
  %v1253 = vadd.f32 %v1252, 1.0
  %v1254 = vmul.f32 %v1253, 0.5
  %v1255 = vmul.f32 %v1242, %v1254
  %v1256 = vpack.c.bf16 %v1255, %v1255
  %v1257 = vld [vmem:[%s14] sm:$0xf]
  %v1258 = vld [vmem:[%s14 + $0x4] sm:$0xf]
  %v1259 = vld [vmem:[%s14 + $0x8] sm:$0xf]
  %v1260 = vld [vmem:[%s14 + $0xc] sm:$0xf]
  %v1261 = vld [vmem:[%s14 + $0x10] sm:$0xf]
  %v1262 = vld [vmem:[%s14 + $0x14] sm:$0xf]
  %v1263 = vld [vmem:[%s14 + $0x18] sm:$0xf]
  %v1264 = vld [vmem:[%s14 + $0x1c] sm:$0xf]
  %v1273 = vunpack.c.l.b16 %v1257
  %v1274 = vunpack.c.l.b16 %v1258
  %v1275 = vunpack.c.l.b16 %v1259
  %v1276 = vunpack.c.l.b16 %v1260
  %v1277 = vunpack.c.l.b16 %v1261
  %v1278 = vunpack.c.l.b16 %v1262
  %v1279 = vunpack.c.l.b16 %v1263
  %v1280 = vunpack.c.l.b16 %v1264
  %v1281 = vpack.c.b16 %v1274, %v1273
  %v1282 = vpack.c.b16 %v1276, %v1275
  %v1283 = vpack.c.b16 %v1278, %v1277
  %v1284 = vpack.c.b16 %v1280, %v1279
  %v1290 = vsel %vm1005, %v1256, 0
  %1292 = vmatprep.subr.bf16.mxu0 0
  %1293 = vmatpush1.bf16.msra.mxu0 %v1281
  %1294 = vmatprep.subr.bf16.mxu0 0
  %1295 = vmatpush1.bf16.msra.mxu0 %v1282
  %1296 = vmatprep.subr.bf16.mxu0 0
  %1297 = vmatpush1.bf16.msra.mxu0 %v1283
  %1298 = vmatprep.subr.bf16.mxu0 0
  %1299 = vmatpush1.bf16.msra.mxu0 %v1284
  %1300 = vmatprep.subr.bf16.mxu0 0
  %1301 = vmatpush1.bf16.msra.mxu0 0
  %1302 = vmatprep.subr.bf16.mxu0 0
  %1303 = vmatpush1.bf16.msra.mxu0 0
  %1304 = vmatprep.subr.bf16.mxu0 0
  %1305 = vmatpush1.bf16.msra.mxu0 0
  %1306 = vmatprep.subr.bf16.mxu0 0
  %1307 = vmatpush1.bf16.msra.mxu0 0
  %1308 = vmatprep.subr.bf16.mxu0 0
  %1309 = vmatpush1.bf16.msra.mxu0 0
  %1310 = vmatprep.subr.bf16.mxu0 0
  %1311 = vmatpush1.bf16.msra.mxu0 0
  %1312 = vmatprep.subr.bf16.mxu0 0
  %1313 = vmatpush1.bf16.msra.mxu0 0
  %1314 = vmatprep.subr.bf16.mxu0 0
  %1315 = vmatpush1.bf16.msra.mxu0 0
  %1316 = vmatprep.subr.bf16.mxu0 0
  %1317 = vmatpush1.bf16.msra.mxu0 0
  %1318 = vmatprep.subr.bf16.mxu0 0
  %1319 = vmatpush1.bf16.msra.mxu0 0
  %1320 = vmatprep.subr.bf16.mxu0 0
  %1321 = vmatpush1.bf16.msra.mxu0 0
  %1322 = vmatprep.subr.bf16.mxu0 0
  %1323 = vmatpush1.bf16.msra.mxu0 0
  %1324 = vmatprep.mubr.bf16.mxu0 0
  %1325 = vmatmul.mubr.bf16.gmra.mrb[0].mxu0 %v1290
  %v1326 = vpop.f32.mrb[0].mxu0
  %v1327 = vadd.f32 0.0, %v1326
  %v1328 = vpop.f32.mrb[0].mxu0
  %v1329 = vpop.f32.mrb[0].mxu0
  %v1330 = vpop.f32.mrb[0].mxu0
  %1331 = vdwg.mxu0
  %v1332 = vadd.f32 %v1179, %v1327
  %v1333 = vld [vmem:[%s15] sm:$0x1]
  %v1335 = vlaneseq
  %v1336 = vshrl.u32 %v1335, 7
  %v1337 = vsub.s32 0, %v1336
  %v1338 = vrot.slane %v1333, %v1337
  %v1340 = vadd.f32 %v1332, %v1338
  %v1341 = vpack.c.bf16 %v1340, %v1340
  %v1342 = vld [vmem:[%s16] sm:$0xf]
  %v1343 = vld [vmem:[%s16 + $0x4] sm:$0xf]
  %v1344 = vld [vmem:[%s16 + $0x8] sm:$0xf]
  %v1345 = vld [vmem:[%s16 + $0xc] sm:$0xf]
  %v1350 = vunpack.c.l.b16 %v1342
  %v1351 = vunpack.c.l.b16 %v1343
  %v1352 = vunpack.c.l.b16 %v1344
  %v1353 = vunpack.c.l.b16 %v1345
  %v1354 = vpack.c.b16 %v1351, %v1350
  %v1355 = vpack.c.b16 %v1353, %v1352
  %v1359 = vsel %vm81, %v1341, 0
  %1361 = vmatprep.subr.bf16.mxu0 0
  %1362 = vmatpush1.bf16.msra.mxu0 %v1354
  %1363 = vmatprep.subr.bf16.mxu0 0
  %1364 = vmatpush1.bf16.msra.mxu0 %v1355
  %1365 = vmatprep.subr.bf16.mxu0 0
  %1366 = vmatpush1.bf16.msra.mxu0 0
  %1367 = vmatprep.subr.bf16.mxu0 0
  %1368 = vmatpush1.bf16.msra.mxu0 0
  %1369 = vmatprep.subr.bf16.mxu0 0
  %1370 = vmatpush1.bf16.msra.mxu0 0
  %1371 = vmatprep.subr.bf16.mxu0 0
  %1372 = vmatpush1.bf16.msra.mxu0 0
  %1373 = vmatprep.subr.bf16.mxu0 0
  %1374 = vmatpush1.bf16.msra.mxu0 0
  %1375 = vmatprep.subr.bf16.mxu0 0
  %1376 = vmatpush1.bf16.msra.mxu0 0
  %1377 = vmatprep.subr.bf16.mxu0 0
  %1378 = vmatpush1.bf16.msra.mxu0 0
  %1379 = vmatprep.subr.bf16.mxu0 0
  %1380 = vmatpush1.bf16.msra.mxu0 0
  %1381 = vmatprep.subr.bf16.mxu0 0
  %1382 = vmatpush1.bf16.msra.mxu0 0
  %1383 = vmatprep.subr.bf16.mxu0 0
  %1384 = vmatpush1.bf16.msra.mxu0 0
  %1385 = vmatprep.subr.bf16.mxu0 0
  %1386 = vmatpush1.bf16.msra.mxu0 0
  %1387 = vmatprep.subr.bf16.mxu0 0
  %1388 = vmatpush1.bf16.msra.mxu0 0
  %1389 = vmatprep.subr.bf16.mxu0 0
  %1390 = vmatpush1.bf16.msra.mxu0 0
  %1391 = vmatprep.subr.bf16.mxu0 0
  %1392 = vmatpush1.bf16.msra.mxu0 0
  %1393 = vmatprep.mubr.bf16.mxu0 0
  %1394 = vmatmul.mubr.bf16.gmra.mrb[0].mxu0 %v1359
  %v1395 = vpop.f32.mrb[0].mxu0
  %v1396 = vadd.f32 0.0, %v1395
  %v1397 = vpop.f32.mrb[0].mxu0
  %v1398 = vpop.f32.mrb[0].mxu0
  %v1399 = vpop.f32.mrb[0].mxu0
  %1400 = vdwg.mxu0
  %1401 = vst [vmem:[%s17] sm:$0xff] %v1396
  // Predicated region
  $region70: #{cross_modal_forward.1} parent=0 // pred_check
    _
  $region71: #{cross_modal_forward.1} parent=0 // pred_check_branch
    %1403 = sbr.rel (0) target = $region73
  $region72: #{cross_modal_forward.1} parent=0 // pred_region
    _
  $region73: #{cross_modal_forward.1} parent=0 // pred_fallthru
    _
  // Predicated region
  $region74: #{cross_modal_forward.1} parent=0 // pred_check
    _
  $region75: #{cross_modal_forward.1} parent=0 // pred_check_branch
    %1405 = sbr.rel (0) target = $region77
  $region76: #{cross_modal_forward.1} parent=0 // pred_region
    _
  $region77: #{cross_modal_forward.1} parent=0 // pred_fallthru
    _

</llo_original>
